<compile_context>
chip_gen: v7x
topology: tpu7x:2x2x1
jax: 0.10.0
libtpu: 0.0.40
codegen_flags: <defaults>
</compile_context>

<pallas_src>
import functools

import jax
import jax.numpy as jnp
from jax import lax
from jax.experimental import pallas as pl
from jax.experimental.pallas import tpu as pltpu


def _circular_conv3d_kernel(x_hbm, w_ref, bias_ref, o_ref, ring, sems, patch,
                            *, k, p, D, H, W, C_in, C_out, KK, KK_pad,
                            flat_out):
    HW = H * W
    nslots = k + 1
    b = pl.program_id(0)
    d = pl.program_id(1)

    def issue(slot, dsrc):
        pltpu.make_async_copy(x_hbm.at[b, :, dsrc, :], ring.at[slot],
                              sems.at[slot]).start()

    def wait(slot):
        # src index is irrelevant for the wait (same transfer size).
        pltpu.make_async_copy(x_hbm.at[b, :, 0, :], ring.at[slot],
                              sems.at[slot]).wait()

    # ---- depth-ring DMA schedule: one new slice per step --------------------
    @pl.when(d == 0)
    def _():
        # Refill the whole ring at the start of every depth sweep (per batch).
        for kz in range(k):
            issue(kz, (kz - p + D) % D)
        if KK_pad > KK:
            # Zero the sublane-alignment tail once per sweep so the padded
            # weight columns always multiply well-defined zeros.
            patch[KK:, :] = jnp.zeros((KK_pad - KK, HW), patch.dtype)

    @pl.when(d + 1 < D)
    def _():
        # Prefetch the single new slice needed by the next step (overlaps
        # with this step's compute; slot (d+k) % (k+1) is not read this step).
        issue((d + k) % nslots, (d + 1 + p) % D)

    @pl.when(d == 0)
    def _():
        for kz in range(k - 1):
            wait(kz)
    wait((d + k - 1) % nslots)          # newest slice needed by this step

    # ---- fused im2col patch via XLU rolls (no concats / reslices) -----------
    if p > 0:
        col = lax.broadcasted_iota(jnp.int32, (1, HW), 1) % W
        wrap_mask = {}
        for kx in range(k):
            s_pos = (p - kx) % W
            if s_pos != 0 and s_pos not in wrap_mask:
                wrap_mask[s_pos] = col < s_pos

    for kz in range(k):
        x_flat = ring[(d + kz) % nslots]                         # (C_in, HW)
        for kx in range(k):
            s_pos = (p - kx) % W                                 # circular W shift
            if s_pos == 0:
                tap_w = x_flat
            else:
                r_main = pltpu.roll(x_flat, s_pos, axis=1)
                r_wrap = pltpu.roll(x_flat, s_pos + (H - 1) * W, axis=1)
                tap_w = jnp.where(wrap_mask[s_pos], r_wrap, r_main)
            for ky in range(k):
                a_h = ((p - ky) * W) % HW                        # circular H shift
                tap = tap_w if a_h == 0 else pltpu.roll(tap_w, a_h, axis=1)
                t = ((kz * k + ky) * k + kx) * C_in
                # NOTE: C_in < 8 rows -> sublane-masked store; for production
                # C_in (multiple of 8) these become full-sublane stores.
                patch[t:t + C_in, :] = tap.astype(patch.dtype)

    # ---- single fused MXU matmul + bias, lane-dense store -------------------
    acc = jnp.dot(w_ref[...], patch[...], preferred_element_type=jnp.float32)
    acc = acc + bias_ref[...]
    if flat_out:
        o_ref[...] = acc.reshape(1, C_out, HW).astype(o_ref.dtype)
    else:
        o_ref[...] = acc.reshape(1, C_out, 1, H, W).astype(o_ref.dtype)


def circular_conv3d(x, weight, bias, kernel_size, compute_dtype=jnp.float32):
    """CircularConv3d forward.

    x: (B, C_in, D, H, W); weight: (C_out, C_in, k, k, k); bias: (C_out,).
    compute_dtype: dtype of the im2col patch + fused weights fed to the MXU
      (jnp.bfloat16 halves patch VMEM and speeds the matmul; accumulation is
      always f32 -- re-validate tolerances if used).
    """
    B, C_in, D, H, W = x.shape
    C_out = weight.shape[0]
    k = int(kernel_size)
    assert k % 2 == 1
    p = k // 2
    assert p <= D and p <= H and p <= W, "circular pad must not exceed dims"
    HW = H * W
    KK = k * k * k * C_in
    KK_pad = ((KK + 7) // 8) * 8            # sublane-align the contraction dim

    # Pre-fuse weights to (C_out, KK_pad); column order (kz, ky, kx, c_in)
    # matches the in-kernel patch row order.  Padded columns are zero.
    w2d = jnp.transpose(weight, (0, 2, 3, 4, 1)).reshape(C_out, KK)
    w2d = jnp.pad(w2d, ((0, 0), (0, KK_pad - KK))).astype(compute_dtype)
    b2d = bias.reshape(C_out, 1).astype(jnp.float32)

    # Free trailing-dims reshape: every DMA / store becomes lane-dense.
    x_flat = x.reshape(B, C_in, D, HW)

    # Lane-dense flattened output whenever the block is legal (HW % 128 == 0);
    # otherwise fall back to the always-legal 5-D output block.
    flat_out = (HW % 128 == 0) or (D == 1)

    kern = functools.partial(_circular_conv3d_kernel, k=k, p=p, D=D, H=H, W=W,
                             C_in=C_in, C_out=C_out, KK=KK, KK_pad=KK_pad,
                             flat_out=flat_out)

    nslots = k + 1
    if flat_out:
        out_shape = jax.ShapeDtypeStruct((B, C_out, D * HW), x.dtype)
        out_spec = pl.BlockSpec((1, C_out, HW), lambda b, d: (b, 0, d))
    else:
        out_shape = jax.ShapeDtypeStruct((B, C_out, D, H, W), x.dtype)
        out_spec = pl.BlockSpec((1, C_out, 1, H, W),
                                lambda b, d: (b, 0, d, 0, 0))

    x_item = jnp.dtype(x.dtype).itemsize
    c_item = jnp.dtype(compute_dtype).itemsize
    vmem_bytes = (nslots * C_in * HW * x_item            # depth ring
                  + KK_pad * HW * c_item                 # im2col patch
                  + 2 * C_out * KK_pad * c_item          # weights (dbl buf)
                  + 2 * C_out * HW * x_item              # output (dbl buf)
                  + 2 * C_out * 4)                       # bias
    vmem_limit = int(min(100 * 2**20, max(32 * 2**20, 2 * vmem_bytes)))

    flops = 2 * B * D * HW * KK * C_out
    bytes_accessed = int(x_item * B * (D + k - 1) * C_in * HW   # input (+refills)
                         + x_item * B * C_out * D * HW          # output
                         + c_item * C_out * KK_pad + 4 * C_out)  # weights + bias

    out = pl.pallas_call(
        kern,
        out_shape=out_shape,
        grid=(B, D),
        in_specs=[
            pl.BlockSpec(memory_space=pl.ANY),                    # x: raw HBM ref
            pl.BlockSpec((C_out, KK_pad), lambda b, d: (0, 0)),   # weights (resident)
            pl.BlockSpec((C_out, 1), lambda b, d: (0, 0)),        # bias (resident)
        ],
        out_specs=out_spec,
        scratch_shapes=[
            pltpu.VMEM((nslots, C_in, HW), x.dtype),              # depth ring
            pltpu.SemaphoreType.DMA((nslots,)),
            pltpu.VMEM((KK_pad, HW), compute_dtype),              # im2col patch
        ],
        compiler_params=pltpu.CompilerParams(
            dimension_semantics=("parallel", "arbitrary"),
            vmem_limit_bytes=vmem_limit),
        cost_estimate=pl.CostEstimate(flops=flops, transcendentals=0,
                                      bytes_accessed=bytes_accessed),
    )(x_flat, w2d, b2d)

    if flat_out:
        out = out.reshape(B, C_out, D, H, W)
    return out


# ----------------------------------------------------------------------------
# Pure-JAX reference (correctness check).
# ----------------------------------------------------------------------------
def ref_circular_conv3d(x, weight, bias, kernel_size):
    p = kernel_size // 2
    xpad = jnp.pad(x, ((0, 0), (0, 0), (p, p), (p, p), (p, p)), mode="wrap")
    y = jax.lax.conv_general_dilated(
        xpad, weight, window_strides=(1, 1, 1), padding="VALID",
        dimension_numbers=("NCDHW", "OIDHW", "NCDHW"))
    return y + bias[None, :, None, None, None]


if __name__ == "__main__":
    B, C_in, C_out, D, H, W, K = 2, 4, 8, 8, 16, 16, 3
    key = jax.random.PRNGKey(0)
    k1, k2, k3 = jax.random.split(key, 3)
    x = jax.random.normal(k1, (B, C_in, D, H, W), dtype=jnp.float32)
    weight = (0.1 * jax.random.normal(k2, (C_out, C_in, K, K, K))).astype(jnp.float32)
    bias = (0.1 * jax.random.normal(k3, (C_out,))).astype(jnp.float32)

    conv = jax.jit(circular_conv3d, static_argnums=(3,))
    out = jax.block_until_ready(conv(x, weight, bias, K))
    ref = jax.block_until_ready(ref_circular_conv3d(x, weight, bias, K))

    assert out.shape == (B, C_out, D, H, W)
    err = jnp.max(jnp.abs(out - ref))
    assert jnp.allclose(out, ref, rtol=1e-4, atol=1e-4), f"max abs err {err}"
    print("KERNEL_OK")
</pallas_src>

<mosaic_0001>
module attributes {stable_mosaic.version = 11 : i64} {
  func.func @_circular_conv3d_kernel(%arg0: i32, %arg1: i32, %arg2: memref<2x4x8x256xf32, #tpu.memory_space<any>>, %arg3: memref<8x112xf32, #tpu.memory_space<vmem>>, %arg4: memref<8x1xf32, #tpu.memory_space<vmem>>, %arg5: memref<1x8x256xf32, #tpu.memory_space<vmem>>, %arg6: memref<4x4x256xf32, #tpu.memory_space<vmem>>, %arg7: memref<4x!tpu.dma_semaphore, #tpu.memory_space<semaphore_mem>>, %arg8: memref<112x256xf32, #tpu.memory_space<vmem>>) attributes {dimension_semantics = [#tpu.dimension_semantics<parallel>, #tpu.dimension_semantics<arbitrary>], iteration_bounds = array<i64: 2, 8>, scalar_prefetch = 0 : i64, scratch_operands = 3 : i64, tpu.core_type = #tpu.core_type<tc>, window_params = [{}, {pipeline_mode = #tpu.pipeline_mode<synchronous>, transform_indices = @transform_1, window_bounds = array<i64: 8, 112>}, {pipeline_mode = #tpu.pipeline_mode<synchronous>, transform_indices = @transform_2, window_bounds = array<i64: 8, 1>}, {transform_indices = @transform_3, window_bounds = array<i64: 1, 8, 256>}]} {
    %c0_i32 = arith.constant 0 : i32
    %0 = arith.cmpi eq, %arg1, %c0_i32 : i32
    %1 = arith.extui %0 : i1 to i32
    %c0_i32_0 = arith.constant 0 : i32
    %2 = arith.cmpi ne, %1, %c0_i32_0 : i32
    scf.if %2 {
      %c7_i32 = arith.constant 7 : i32
      %c0_i32_110 = arith.constant 0 : i32
      %c0_i32_111 = arith.constant 0 : i32
      %c0_i32_112 = arith.constant 0 : i32
      %c0_i32_113 = arith.constant 0 : i32
      %174 = tpu.memref_slice %arg2[%arg0, %c0_i32_112, %c7_i32, %c0_i32_113] : memref<2x4x8x256xf32, #tpu.memory_space<any>> -> memref<1x4x1x256xf32, #tpu.memory_space<any>>
      %175 = tpu.memref_squeeze %174 : memref<1x4x1x256xf32, #tpu.memory_space<any>> -> memref<4x256xf32, #tpu.memory_space<any>>
      %c0_i32_114 = arith.constant 0 : i32
      %c0_i32_115 = arith.constant 0 : i32
      %176 = tpu.memref_slice %arg6[%c0_i32_110, %c0_i32_114, %c0_i32_115] : memref<4x4x256xf32, #tpu.memory_space<vmem>> -> memref<1x4x256xf32, #tpu.memory_space<vmem>>
      %177 = tpu.memref_squeeze %176 : memref<1x4x256xf32, #tpu.memory_space<vmem>> -> memref<4x256xf32, #tpu.memory_space<vmem>>
      %178 = tpu.memref_slice %arg7[%c0_i32_111] : memref<4x!tpu.dma_semaphore, #tpu.memory_space<semaphore_mem>> -> memref<1x!tpu.dma_semaphore, #tpu.memory_space<semaphore_mem>>
      %179 = tpu.memref_squeeze %178 : memref<1x!tpu.dma_semaphore, #tpu.memory_space<semaphore_mem>> -> memref<!tpu.dma_semaphore, #tpu.memory_space<semaphore_mem>>
      tpu.enqueue_dma source(%175 : memref<4x256xf32, #tpu.memory_space<any>>) target(%177 : memref<4x256xf32, #tpu.memory_space<vmem>>) target_semaphore(%179 : memref<!tpu.dma_semaphore, #tpu.memory_space<semaphore_mem>>)
      %c0_i32_116 = arith.constant 0 : i32
      %c1_i32_117 = arith.constant 1 : i32
      %c1_i32_118 = arith.constant 1 : i32
      %c0_i32_119 = arith.constant 0 : i32
      %c0_i32_120 = arith.constant 0 : i32
      %180 = tpu.memref_slice %arg2[%arg0, %c0_i32_119, %c0_i32_116, %c0_i32_120] : memref<2x4x8x256xf32, #tpu.memory_space<any>> -> memref<1x4x1x256xf32, #tpu.memory_space<any>>
      %181 = tpu.memref_squeeze %180 : memref<1x4x1x256xf32, #tpu.memory_space<any>> -> memref<4x256xf32, #tpu.memory_space<any>>
      %c0_i32_121 = arith.constant 0 : i32
      %c0_i32_122 = arith.constant 0 : i32
      %182 = tpu.memref_slice %arg6[%c1_i32_117, %c0_i32_121, %c0_i32_122] : memref<4x4x256xf32, #tpu.memory_space<vmem>> -> memref<1x4x256xf32, #tpu.memory_space<vmem>>
      %183 = tpu.memref_squeeze %182 : memref<1x4x256xf32, #tpu.memory_space<vmem>> -> memref<4x256xf32, #tpu.memory_space<vmem>>
      %184 = tpu.memref_slice %arg7[%c1_i32_118] : memref<4x!tpu.dma_semaphore, #tpu.memory_space<semaphore_mem>> -> memref<1x!tpu.dma_semaphore, #tpu.memory_space<semaphore_mem>>
      %185 = tpu.memref_squeeze %184 : memref<1x!tpu.dma_semaphore, #tpu.memory_space<semaphore_mem>> -> memref<!tpu.dma_semaphore, #tpu.memory_space<semaphore_mem>>
      tpu.enqueue_dma source(%181 : memref<4x256xf32, #tpu.memory_space<any>>) target(%183 : memref<4x256xf32, #tpu.memory_space<vmem>>) target_semaphore(%185 : memref<!tpu.dma_semaphore, #tpu.memory_space<semaphore_mem>>)
      %c1_i32_123 = arith.constant 1 : i32
      %c2_i32_124 = arith.constant 2 : i32
      %c2_i32_125 = arith.constant 2 : i32
      %c0_i32_126 = arith.constant 0 : i32
      %c0_i32_127 = arith.constant 0 : i32
      %186 = tpu.memref_slice %arg2[%arg0, %c0_i32_126, %c1_i32_123, %c0_i32_127] : memref<2x4x8x256xf32, #tpu.memory_space<any>> -> memref<1x4x1x256xf32, #tpu.memory_space<any>>
      %187 = tpu.memref_squeeze %186 : memref<1x4x1x256xf32, #tpu.memory_space<any>> -> memref<4x256xf32, #tpu.memory_space<any>>
      %c0_i32_128 = arith.constant 0 : i32
      %c0_i32_129 = arith.constant 0 : i32
      %188 = tpu.memref_slice %arg6[%c2_i32_124, %c0_i32_128, %c0_i32_129] : memref<4x4x256xf32, #tpu.memory_space<vmem>> -> memref<1x4x256xf32, #tpu.memory_space<vmem>>
      %189 = tpu.memref_squeeze %188 : memref<1x4x256xf32, #tpu.memory_space<vmem>> -> memref<4x256xf32, #tpu.memory_space<vmem>>
      %190 = tpu.memref_slice %arg7[%c2_i32_125] : memref<4x!tpu.dma_semaphore, #tpu.memory_space<semaphore_mem>> -> memref<1x!tpu.dma_semaphore, #tpu.memory_space<semaphore_mem>>
      %191 = tpu.memref_squeeze %190 : memref<1x!tpu.dma_semaphore, #tpu.memory_space<semaphore_mem>> -> memref<!tpu.dma_semaphore, #tpu.memory_space<semaphore_mem>>
      tpu.enqueue_dma source(%187 : memref<4x256xf32, #tpu.memory_space<any>>) target(%189 : memref<4x256xf32, #tpu.memory_space<vmem>>) target_semaphore(%191 : memref<!tpu.dma_semaphore, #tpu.memory_space<semaphore_mem>>)
      %cst_130 = arith.constant 0.000000e+00 : f32
      %192 = vector.broadcast %cst_130 : f32 to vector<4x256xf32>
      %c108 = arith.constant 108 : index
      %c0_131 = arith.constant 0 : index
      %193 = vector.load %arg8[%c108, %c0_131] : memref<112x256xf32, #tpu.memory_space<vmem>>, vector<4x256xf32>
      tpu.vector_store %arg8[%c108, %c0_131], %192 {strides = array<i32>} : memref<112x256xf32, #tpu.memory_space<vmem>>, vector<4x256xf32>,
    } else {
    }
    %c1_i32 = arith.constant 1 : i32
    %3 = arith.addi %arg1, %c1_i32 : i32
    %c8_i32 = arith.constant 8 : i32
    %4 = arith.cmpi slt, %3, %c8_i32 : i32
    %5 = arith.extui %4 : i1 to i32
    %c0_i32_1 = arith.constant 0 : i32
    %6 = arith.cmpi ne, %5, %c0_i32_1 : i32
    scf.if %6 {
      %c3_i32_110 = arith.constant 3 : i32
      %174 = arith.addi %arg1, %c3_i32_110 : i32
      %c4_i32_111 = arith.constant 4 : i32
      %c0_i32_112 = arith.constant 0 : i32
      %175 = arith.cmpi eq, %c4_i32_111, %c0_i32_112 : i32
      %c1_i32_113 = arith.constant 1 : i32
      %176 = arith.select %175, %c1_i32_113, %c4_i32_111 : i32
      %177 = arith.remsi %174, %176 : i32
      %c0_i32_114 = arith.constant 0 : i32
      %178 = arith.cmpi ne, %177, %c0_i32_114 : i32
      %c0_i32_115 = arith.constant 0 : i32
      %179 = arith.cmpi slt, %177, %c0_i32_115 : i32
      %c0_i32_116 = arith.constant 0 : i32
      %180 = arith.cmpi slt, %176, %c0_i32_116 : i32
      %181 = arith.xori %179, %180 : i1
      %182 = arith.andi %181, %178 : i1
      %183 = arith.addi %177, %176 : i32
      %184 = arith.select %182, %183, %177 : i32
      %c1_i32_117 = arith.constant 1 : i32
      %185 = arith.addi %arg1, %c1_i32_117 : i32
      %c1_i32_118 = arith.constant 1 : i32
      %186 = arith.addi %185, %c1_i32_118 : i32
      %c8_i32_119 = arith.constant 8 : i32
      %c0_i32_120 = arith.constant 0 : i32
      %187 = arith.cmpi eq, %c8_i32_119, %c0_i32_120 : i32
      %c1_i32_121 = arith.constant 1 : i32
      %188 = arith.select %187, %c1_i32_121, %c8_i32_119 : i32
      %189 = arith.remsi %186, %188 : i32
      %c0_i32_122 = arith.constant 0 : i32
      %190 = arith.cmpi ne, %189, %c0_i32_122 : i32
      %c0_i32_123 = arith.constant 0 : i32
      %191 = arith.cmpi slt, %189, %c0_i32_123 : i32
      %c0_i32_124 = arith.constant 0 : i32
      %192 = arith.cmpi slt, %188, %c0_i32_124 : i32
      %193 = arith.xori %191, %192 : i1
      %194 = arith.andi %193, %190 : i1
      %195 = arith.addi %189, %188 : i32
      %196 = arith.select %194, %195, %189 : i32
      %c0_i32_125 = arith.constant 0 : i32
      %c0_i32_126 = arith.constant 0 : i32
      %197 = tpu.memref_slice %arg2[%arg0, %c0_i32_125, %196, %c0_i32_126] : memref<2x4x8x256xf32, #tpu.memory_space<any>> -> memref<1x4x1x256xf32, #tpu.memory_space<any>>
      %198 = tpu.memref_squeeze %197 : memref<1x4x1x256xf32, #tpu.memory_space<any>> -> memref<4x256xf32, #tpu.memory_space<any>>
      %c0_i32_127 = arith.constant 0 : i32
      %c0_i32_128 = arith.constant 0 : i32
      %199 = tpu.memref_slice %arg6[%184, %c0_i32_127, %c0_i32_128] : memref<4x4x256xf32, #tpu.memory_space<vmem>> -> memref<1x4x256xf32, #tpu.memory_space<vmem>>
      %200 = tpu.memref_squeeze %199 : memref<1x4x256xf32, #tpu.memory_space<vmem>> -> memref<4x256xf32, #tpu.memory_space<vmem>>
      %201 = tpu.memref_slice %arg7[%184] : memref<4x!tpu.dma_semaphore, #tpu.memory_space<semaphore_mem>> -> memref<1x!tpu.dma_semaphore, #tpu.memory_space<semaphore_mem>>
      %202 = tpu.memref_squeeze %201 : memref<1x!tpu.dma_semaphore, #tpu.memory_space<semaphore_mem>> -> memref<!tpu.dma_semaphore, #tpu.memory_space<semaphore_mem>>
      tpu.enqueue_dma source(%198 : memref<4x256xf32, #tpu.memory_space<any>>) target(%200 : memref<4x256xf32, #tpu.memory_space<vmem>>) target_semaphore(%202 : memref<!tpu.dma_semaphore, #tpu.memory_space<semaphore_mem>>)
    } else {
    }
    %c0_i32_2 = arith.constant 0 : i32
    %7 = arith.cmpi eq, %arg1, %c0_i32_2 : i32
    %8 = arith.extui %7 : i1 to i32
    %c0_i32_3 = arith.constant 0 : i32
    %9 = arith.cmpi ne, %8, %c0_i32_3 : i32
    scf.if %9 {
      %c0_i32_110 = arith.constant 0 : i32
      %c0_i32_111 = arith.constant 0 : i32
      %c0_i32_112 = arith.constant 0 : i32
      %c0_i32_113 = arith.constant 0 : i32
      %c0_i32_114 = arith.constant 0 : i32
      %174 = tpu.memref_slice %arg2[%arg0, %c0_i32_113, %c0_i32_110, %c0_i32_114] : memref<2x4x8x256xf32, #tpu.memory_space<any>> -> memref<1x4x1x256xf32, #tpu.memory_space<any>>
      %175 = tpu.memref_squeeze %174 : memref<1x4x1x256xf32, #tpu.memory_space<any>> -> memref<4x256xf32, #tpu.memory_space<any>>
      %c0_i32_115 = arith.constant 0 : i32
      %c0_i32_116 = arith.constant 0 : i32
      %176 = tpu.memref_slice %arg6[%c0_i32_111, %c0_i32_115, %c0_i32_116] : memref<4x4x256xf32, #tpu.memory_space<vmem>> -> memref<1x4x256xf32, #tpu.memory_space<vmem>>
      %177 = tpu.memref_squeeze %176 : memref<1x4x256xf32, #tpu.memory_space<vmem>> -> memref<4x256xf32, #tpu.memory_space<vmem>>
      %178 = tpu.memref_slice %arg7[%c0_i32_112] : memref<4x!tpu.dma_semaphore, #tpu.memory_space<semaphore_mem>> -> memref<1x!tpu.dma_semaphore, #tpu.memory_space<semaphore_mem>>
      %179 = tpu.memref_squeeze %178 : memref<1x!tpu.dma_semaphore, #tpu.memory_space<semaphore_mem>> -> memref<!tpu.dma_semaphore, #tpu.memory_space<semaphore_mem>>
      tpu.wait_dma2 semaphore(%179 : memref<!tpu.dma_semaphore, #tpu.memory_space<semaphore_mem>>) src(%175 : memref<4x256xf32, #tpu.memory_space<any>>) dst(%177 : memref<4x256xf32, #tpu.memory_space<vmem>>)
      %c0_i32_117 = arith.constant 0 : i32
      %c1_i32_118 = arith.constant 1 : i32
      %c1_i32_119 = arith.constant 1 : i32
      %c0_i32_120 = arith.constant 0 : i32
      %c0_i32_121 = arith.constant 0 : i32
      %180 = tpu.memref_slice %arg2[%arg0, %c0_i32_120, %c0_i32_117, %c0_i32_121] : memref<2x4x8x256xf32, #tpu.memory_space<any>> -> memref<1x4x1x256xf32, #tpu.memory_space<any>>
      %181 = tpu.memref_squeeze %180 : memref<1x4x1x256xf32, #tpu.memory_space<any>> -> memref<4x256xf32, #tpu.memory_space<any>>
      %c0_i32_122 = arith.constant 0 : i32
      %c0_i32_123 = arith.constant 0 : i32
      %182 = tpu.memref_slice %arg6[%c1_i32_118, %c0_i32_122, %c0_i32_123] : memref<4x4x256xf32, #tpu.memory_space<vmem>> -> memref<1x4x256xf32, #tpu.memory_space<vmem>>
      %183 = tpu.memref_squeeze %182 : memref<1x4x256xf32, #tpu.memory_space<vmem>> -> memref<4x256xf32, #tpu.memory_space<vmem>>
      %184 = tpu.memref_slice %arg7[%c1_i32_119] : memref<4x!tpu.dma_semaphore, #tpu.memory_space<semaphore_mem>> -> memref<1x!tpu.dma_semaphore, #tpu.memory_space<semaphore_mem>>
      %185 = tpu.memref_squeeze %184 : memref<1x!tpu.dma_semaphore, #tpu.memory_space<semaphore_mem>> -> memref<!tpu.dma_semaphore, #tpu.memory_space<semaphore_mem>>
      tpu.wait_dma2 semaphore(%185 : memref<!tpu.dma_semaphore, #tpu.memory_space<semaphore_mem>>) src(%181 : memref<4x256xf32, #tpu.memory_space<any>>) dst(%183 : memref<4x256xf32, #tpu.memory_space<vmem>>)
    } else {
    }
    %c3_i32 = arith.constant 3 : i32
    %10 = arith.addi %arg1, %c3_i32 : i32
    %c1_i32_4 = arith.constant 1 : i32
    %11 = arith.subi %10, %c1_i32_4 : i32
    %c4_i32 = arith.constant 4 : i32
    %c0_i32_5 = arith.constant 0 : i32
    %12 = arith.cmpi eq, %c4_i32, %c0_i32_5 : i32
    %c1_i32_6 = arith.constant 1 : i32
    %13 = arith.select %12, %c1_i32_6, %c4_i32 : i32
    %14 = arith.remsi %11, %13 : i32
    %c0_i32_7 = arith.constant 0 : i32
    %15 = arith.cmpi ne, %14, %c0_i32_7 : i32
    %c0_i32_8 = arith.constant 0 : i32
    %16 = arith.cmpi slt, %14, %c0_i32_8 : i32
    %c0_i32_9 = arith.constant 0 : i32
    %17 = arith.cmpi slt, %13, %c0_i32_9 : i32
    %18 = arith.xori %16, %17 : i1
    %19 = arith.andi %18, %15 : i1
    %20 = arith.addi %14, %13 : i32
    %21 = arith.select %19, %20, %14 : i32
    %c0_i32_10 = arith.constant 0 : i32
    %c0_i32_11 = arith.constant 0 : i32
    %c0_i32_12 = arith.constant 0 : i32
    %22 = tpu.memref_slice %arg2[%arg0, %c0_i32_11, %c0_i32_10, %c0_i32_12] : memref<2x4x8x256xf32, #tpu.memory_space<any>> -> memref<1x4x1x256xf32, #tpu.memory_space<any>>
    %23 = tpu.memref_squeeze %22 : memref<1x4x1x256xf32, #tpu.memory_space<any>> -> memref<4x256xf32, #tpu.memory_space<any>>
    %c0_i32_13 = arith.constant 0 : i32
    %c0_i32_14 = arith.constant 0 : i32
    %24 = tpu.memref_slice %arg6[%21, %c0_i32_13, %c0_i32_14] : memref<4x4x256xf32, #tpu.memory_space<vmem>> -> memref<1x4x256xf32, #tpu.memory_space<vmem>>
    %25 = tpu.memref_squeeze %24 : memref<1x4x256xf32, #tpu.memory_space<vmem>> -> memref<4x256xf32, #tpu.memory_space<vmem>>
    %26 = tpu.memref_slice %arg7[%21] : memref<4x!tpu.dma_semaphore, #tpu.memory_space<semaphore_mem>> -> memref<1x!tpu.dma_semaphore, #tpu.memory_space<semaphore_mem>>
    %27 = tpu.memref_squeeze %26 : memref<1x!tpu.dma_semaphore, #tpu.memory_space<semaphore_mem>> -> memref<!tpu.dma_semaphore, #tpu.memory_space<semaphore_mem>>
    tpu.wait_dma2 semaphore(%27 : memref<!tpu.dma_semaphore, #tpu.memory_space<semaphore_mem>>) src(%23 : memref<4x256xf32, #tpu.memory_space<any>>) dst(%25 : memref<4x256xf32, #tpu.memory_space<vmem>>)
    %28 = tpu.iota {dimensions = array<i32: 1>} : vector<1x256xi32>
    %c16_i32 = arith.constant 16 : i32
    %c0_i32_15 = arith.constant 0 : i32
    %29 = arith.cmpi eq, %c16_i32, %c0_i32_15 : i32
    %c1_i32_16 = arith.constant 1 : i32
    %30 = arith.select %29, %c1_i32_16, %c16_i32 : i32
    %31 = vector.broadcast %30 : i32 to vector<1x256xi32>
    %32 = arith.remsi %28, %31 : vector<1x256xi32>
    %c0_i32_17 = arith.constant 0 : i32
    %33 = vector.broadcast %c0_i32_17 : i32 to vector<1x256xi32>
    %34 = arith.cmpi ne, %32, %33 : vector<1x256xi32>
    %c0_i32_18 = arith.constant 0 : i32
    %35 = vector.broadcast %c0_i32_18 : i32 to vector<1x256xi32>
    %36 = arith.cmpi slt, %32, %35 : vector<1x256xi32>
    %c0_i32_19 = arith.constant 0 : i32
    %37 = arith.cmpi slt, %30, %c0_i32_19 : i32
    %38 = vector.broadcast %37 : i1 to vector<1x256xi1>
    %39 = vector.broadcast %38 : vector<1x256xi1> to vector<1x256xi1>
    %40 = arith.xori %36, %39 : vector<1x256xi1>
    %41 = arith.andi %40, %34 : vector<1x256xi1>
    %42 = vector.broadcast %30 : i32 to vector<1x256xi32>
    %43 = arith.addi %32, %42 : vector<1x256xi32>
    %44 = arith.select %41, %43, %32 : vector<1x256xi1>, vector<1x256xi32>
    %c1_i32_20 = arith.constant 1 : i32
    %45 = vector.broadcast %c1_i32_20 : i32 to vector<1x256xi32>
    %46 = arith.cmpi slt, %44, %45 : vector<1x256xi32>
    %c15_i32 = arith.constant 15 : i32
    %47 = vector.broadcast %c15_i32 : i32 to vector<1x256xi32>
    %48 = arith.cmpi slt, %44, %47 : vector<1x256xi32>
    %c0_i32_21 = arith.constant 0 : i32
    %49 = arith.addi %arg1, %c0_i32_21 : i32
    %c4_i32_22 = arith.constant 4 : i32
    %c0_i32_23 = arith.constant 0 : i32
    %50 = arith.cmpi eq, %c4_i32_22, %c0_i32_23 : i32
    %c1_i32_24 = arith.constant 1 : i32
    %51 = arith.select %50, %c1_i32_24, %c4_i32_22 : i32
    %52 = arith.remsi %49, %51 : i32
    %c0_i32_25 = arith.constant 0 : i32
    %53 = arith.cmpi ne, %52, %c0_i32_25 : i32
    %c0_i32_26 = arith.constant 0 : i32
    %54 = arith.cmpi slt, %52, %c0_i32_26 : i32
    %c0_i32_27 = arith.constant 0 : i32
    %55 = arith.cmpi slt, %51, %c0_i32_27 : i32
    %56 = arith.xori %54, %55 : i1
    %57 = arith.andi %56, %53 : i1
    %58 = arith.addi %52, %51 : i32
    %59 = arith.select %57, %58, %52 : i32
    %60 = arith.index_cast %59 : i32 to index
    %c0 = arith.constant 0 : index
    %c0_28 = arith.constant 0 : index
    %61 = vector.load %arg6[%60, %c0, %c0_28] : memref<4x4x256xf32, #tpu.memory_space<vmem>>, vector<1x4x256xf32>
    %62 = vector.shape_cast %61 : vector<1x4x256xf32> to vector<4x256xf32>
    %c1_i32_29 = arith.constant 1 : i32
    %63 = tpu.dynamic_rotate %62 by %c1_i32_29 dim 1 : vector<4x256xf32>, i32 -> vector<4x256xf32>
    %c241_i32 = arith.constant 241 : i32
    %64 = tpu.dynamic_rotate %62 by %c241_i32 dim 1 : vector<4x256xf32>, i32 -> vector<4x256xf32>
    %65 = vector.shape_cast %46 : vector<1x256xi1> to vector<1x256xi1>
    %66 = vector.broadcast %65 : vector<1x256xi1> to vector<4x256xi1>
    %67 = arith.select %66, %64, %63 : vector<4x256xi1>, vector<4x256xf32>
    %c16_i32_30 = arith.constant 16 : i32
    %68 = tpu.dynamic_rotate %67 by %c16_i32_30 dim 1 : vector<4x256xf32>, i32 -> vector<4x256xf32>
    %c0_31 = arith.constant 0 : index
    %c0_32 = arith.constant 0 : index
    %69 = vector.load %arg8[%c0_31, %c0_32] : memref<112x256xf32, #tpu.memory_space<vmem>>, vector<4x256xf32>
    tpu.vector_store %arg8[%c0_31, %c0_32], %68 {strides = array<i32>} : memref<112x256xf32, #tpu.memory_space<vmem>>, vector<4x256xf32>,
    %c12 = arith.constant 12 : index
    %c0_33 = arith.constant 0 : index
    %70 = vector.load %arg8[%c12, %c0_33] : memref<112x256xf32, #tpu.memory_space<vmem>>, vector<4x256xf32>
    tpu.vector_store %arg8[%c12, %c0_33], %67 {strides = array<i32>} : memref<112x256xf32, #tpu.memory_space<vmem>>, vector<4x256xf32>,
    %c240_i32 = arith.constant 240 : i32
    %71 = tpu.dynamic_rotate %67 by %c240_i32 dim 1 : vector<4x256xf32>, i32 -> vector<4x256xf32>
    %c24 = arith.constant 24 : index
    %c0_34 = arith.constant 0 : index
    %72 = vector.load %arg8[%c24, %c0_34] : memref<112x256xf32, #tpu.memory_space<vmem>>, vector<4x256xf32>
    tpu.vector_store %arg8[%c24, %c0_34], %71 {strides = array<i32>} : memref<112x256xf32, #tpu.memory_space<vmem>>, vector<4x256xf32>,
    %c16_i32_35 = arith.constant 16 : i32
    %73 = tpu.dynamic_rotate %62 by %c16_i32_35 dim 1 : vector<4x256xf32>, i32 -> vector<4x256xf32>
    %c4 = arith.constant 4 : index
    %c0_36 = arith.constant 0 : index
    %74 = vector.load %arg8[%c4, %c0_36] : memref<112x256xf32, #tpu.memory_space<vmem>>, vector<4x256xf32>
    tpu.vector_store %arg8[%c4, %c0_36], %73 {strides = array<i32>} : memref<112x256xf32, #tpu.memory_space<vmem>>, vector<4x256xf32>,
    %c16 = arith.constant 16 : index
    %c0_37 = arith.constant 0 : index
    %75 = vector.load %arg8[%c16, %c0_37] : memref<112x256xf32, #tpu.memory_space<vmem>>, vector<4x256xf32>
    tpu.vector_store %arg8[%c16, %c0_37], %62 {strides = array<i32>} : memref<112x256xf32, #tpu.memory_space<vmem>>, vector<4x256xf32>,
    %c240_i32_38 = arith.constant 240 : i32
    %76 = tpu.dynamic_rotate %62 by %c240_i32_38 dim 1 : vector<4x256xf32>, i32 -> vector<4x256xf32>
    %c28 = arith.constant 28 : index
    %c0_39 = arith.constant 0 : index
    %77 = vector.load %arg8[%c28, %c0_39] : memref<112x256xf32, #tpu.memory_space<vmem>>, vector<4x256xf32>
    tpu.vector_store %arg8[%c28, %c0_39], %76 {strides = array<i32>} : memref<112x256xf32, #tpu.memory_space<vmem>>, vector<4x256xf32>,
    %c15_i32_40 = arith.constant 15 : i32
    %78 = tpu.dynamic_rotate %62 by %c15_i32_40 dim 1 : vector<4x256xf32>, i32 -> vector<4x256xf32>
    %c255_i32 = arith.constant 255 : i32
    %79 = tpu.dynamic_rotate %62 by %c255_i32 dim 1 : vector<4x256xf32>, i32 -> vector<4x256xf32>
    %80 = vector.shape_cast %48 : vector<1x256xi1> to vector<1x256xi1>
    %81 = vector.broadcast %80 : vector<1x256xi1> to vector<4x256xi1>
    %82 = arith.select %81, %79, %78 : vector<4x256xi1>, vector<4x256xf32>
    %c16_i32_41 = arith.constant 16 : i32
    %83 = tpu.dynamic_rotate %82 by %c16_i32_41 dim 1 : vector<4x256xf32>, i32 -> vector<4x256xf32>
    %c8 = arith.constant 8 : index
    %c0_42 = arith.constant 0 : index
    %84 = vector.load %arg8[%c8, %c0_42] : memref<112x256xf32, #tpu.memory_space<vmem>>, vector<4x256xf32>
    tpu.vector_store %arg8[%c8, %c0_42], %83 {strides = array<i32>} : memref<112x256xf32, #tpu.memory_space<vmem>>, vector<4x256xf32>,
    %c20 = arith.constant 20 : index
    %c0_43 = arith.constant 0 : index
    %85 = vector.load %arg8[%c20, %c0_43] : memref<112x256xf32, #tpu.memory_space<vmem>>, vector<4x256xf32>
    tpu.vector_store %arg8[%c20, %c0_43], %82 {strides = array<i32>} : memref<112x256xf32, #tpu.memory_space<vmem>>, vector<4x256xf32>,
    %c240_i32_44 = arith.constant 240 : i32
    %86 = tpu.dynamic_rotate %82 by %c240_i32_44 dim 1 : vector<4x256xf32>, i32 -> vector<4x256xf32>
    %c32 = arith.constant 32 : index
    %c0_45 = arith.constant 0 : index
    %87 = vector.load %arg8[%c32, %c0_45] : memref<112x256xf32, #tpu.memory_space<vmem>>, vector<4x256xf32>
    tpu.vector_store %arg8[%c32, %c0_45], %86 {strides = array<i32>} : memref<112x256xf32, #tpu.memory_space<vmem>>, vector<4x256xf32>,
    %c1_i32_46 = arith.constant 1 : i32
    %88 = arith.addi %arg1, %c1_i32_46 : i32
    %c4_i32_47 = arith.constant 4 : i32
    %c0_i32_48 = arith.constant 0 : i32
    %89 = arith.cmpi eq, %c4_i32_47, %c0_i32_48 : i32
    %c1_i32_49 = arith.constant 1 : i32
    %90 = arith.select %89, %c1_i32_49, %c4_i32_47 : i32
    %91 = arith.remsi %88, %90 : i32
    %c0_i32_50 = arith.constant 0 : i32
    %92 = arith.cmpi ne, %91, %c0_i32_50 : i32
    %c0_i32_51 = arith.constant 0 : i32
    %93 = arith.cmpi slt, %91, %c0_i32_51 : i32
    %c0_i32_52 = arith.constant 0 : i32
    %94 = arith.cmpi slt, %90, %c0_i32_52 : i32
    %95 = arith.xori %93, %94 : i1
    %96 = arith.andi %95, %92 : i1
    %97 = arith.addi %91, %90 : i32
    %98 = arith.select %96, %97, %91 : i32
    %99 = arith.index_cast %98 : i32 to index
    %c0_53 = arith.constant 0 : index
    %c0_54 = arith.constant 0 : index
    %100 = vector.load %arg6[%99, %c0_53, %c0_54] : memref<4x4x256xf32, #tpu.memory_space<vmem>>, vector<1x4x256xf32>
    %101 = vector.shape_cast %100 : vector<1x4x256xf32> to vector<4x256xf32>
    %c1_i32_55 = arith.constant 1 : i32
    %102 = tpu.dynamic_rotate %101 by %c1_i32_55 dim 1 : vector<4x256xf32>, i32 -> vector<4x256xf32>
    %c241_i32_56 = arith.constant 241 : i32
    %103 = tpu.dynamic_rotate %101 by %c241_i32_56 dim 1 : vector<4x256xf32>, i32 -> vector<4x256xf32>
    %104 = vector.shape_cast %46 : vector<1x256xi1> to vector<1x256xi1>
    %105 = vector.broadcast %104 : vector<1x256xi1> to vector<4x256xi1>
    %106 = arith.select %105, %103, %102 : vector<4x256xi1>, vector<4x256xf32>
    %c16_i32_57 = arith.constant 16 : i32
    %107 = tpu.dynamic_rotate %106 by %c16_i32_57 dim 1 : vector<4x256xf32>, i32 -> vector<4x256xf32>
    %c36 = arith.constant 36 : index
    %c0_58 = arith.constant 0 : index
    %108 = vector.load %arg8[%c36, %c0_58] : memref<112x256xf32, #tpu.memory_space<vmem>>, vector<4x256xf32>
    tpu.vector_store %arg8[%c36, %c0_58], %107 {strides = array<i32>} : memref<112x256xf32, #tpu.memory_space<vmem>>, vector<4x256xf32>,
    %c48 = arith.constant 48 : index
    %c0_59 = arith.constant 0 : index
    %109 = vector.load %arg8[%c48, %c0_59] : memref<112x256xf32, #tpu.memory_space<vmem>>, vector<4x256xf32>
    tpu.vector_store %arg8[%c48, %c0_59], %106 {strides = array<i32>} : memref<112x256xf32, #tpu.memory_space<vmem>>, vector<4x256xf32>,
    %c240_i32_60 = arith.constant 240 : i32
    %110 = tpu.dynamic_rotate %106 by %c240_i32_60 dim 1 : vector<4x256xf32>, i32 -> vector<4x256xf32>
    %c60 = arith.constant 60 : index
    %c0_61 = arith.constant 0 : index
    %111 = vector.load %arg8[%c60, %c0_61] : memref<112x256xf32, #tpu.memory_space<vmem>>, vector<4x256xf32>
    tpu.vector_store %arg8[%c60, %c0_61], %110 {strides = array<i32>} : memref<112x256xf32, #tpu.memory_space<vmem>>, vector<4x256xf32>,
    %c16_i32_62 = arith.constant 16 : i32
    %112 = tpu.dynamic_rotate %101 by %c16_i32_62 dim 1 : vector<4x256xf32>, i32 -> vector<4x256xf32>
    %c40 = arith.constant 40 : index
    %c0_63 = arith.constant 0 : index
    %113 = vector.load %arg8[%c40, %c0_63] : memref<112x256xf32, #tpu.memory_space<vmem>>, vector<4x256xf32>
    tpu.vector_store %arg8[%c40, %c0_63], %112 {strides = array<i32>} : memref<112x256xf32, #tpu.memory_space<vmem>>, vector<4x256xf32>,
    %c52 = arith.constant 52 : index
    %c0_64 = arith.constant 0 : index
    %114 = vector.load %arg8[%c52, %c0_64] : memref<112x256xf32, #tpu.memory_space<vmem>>, vector<4x256xf32>
    tpu.vector_store %arg8[%c52, %c0_64], %101 {strides = array<i32>} : memref<112x256xf32, #tpu.memory_space<vmem>>, vector<4x256xf32>,
    %c240_i32_65 = arith.constant 240 : i32
    %115 = tpu.dynamic_rotate %101 by %c240_i32_65 dim 1 : vector<4x256xf32>, i32 -> vector<4x256xf32>
    %c64 = arith.constant 64 : index
    %c0_66 = arith.constant 0 : index
    %116 = vector.load %arg8[%c64, %c0_66] : memref<112x256xf32, #tpu.memory_space<vmem>>, vector<4x256xf32>
    tpu.vector_store %arg8[%c64, %c0_66], %115 {strides = array<i32>} : memref<112x256xf32, #tpu.memory_space<vmem>>, vector<4x256xf32>,
    %c15_i32_67 = arith.constant 15 : i32
    %117 = tpu.dynamic_rotate %101 by %c15_i32_67 dim 1 : vector<4x256xf32>, i32 -> vector<4x256xf32>
    %c255_i32_68 = arith.constant 255 : i32
    %118 = tpu.dynamic_rotate %101 by %c255_i32_68 dim 1 : vector<4x256xf32>, i32 -> vector<4x256xf32>
    %119 = vector.shape_cast %48 : vector<1x256xi1> to vector<1x256xi1>
    %120 = vector.broadcast %119 : vector<1x256xi1> to vector<4x256xi1>
    %121 = arith.select %120, %118, %117 : vector<4x256xi1>, vector<4x256xf32>
    %c16_i32_69 = arith.constant 16 : i32
    %122 = tpu.dynamic_rotate %121 by %c16_i32_69 dim 1 : vector<4x256xf32>, i32 -> vector<4x256xf32>
    %c44 = arith.constant 44 : index
    %c0_70 = arith.constant 0 : index
    %123 = vector.load %arg8[%c44, %c0_70] : memref<112x256xf32, #tpu.memory_space<vmem>>, vector<4x256xf32>
    tpu.vector_store %arg8[%c44, %c0_70], %122 {strides = array<i32>} : memref<112x256xf32, #tpu.memory_space<vmem>>, vector<4x256xf32>,
    %c56 = arith.constant 56 : index
    %c0_71 = arith.constant 0 : index
    %124 = vector.load %arg8[%c56, %c0_71] : memref<112x256xf32, #tpu.memory_space<vmem>>, vector<4x256xf32>
    tpu.vector_store %arg8[%c56, %c0_71], %121 {strides = array<i32>} : memref<112x256xf32, #tpu.memory_space<vmem>>, vector<4x256xf32>,
    %c240_i32_72 = arith.constant 240 : i32
    %125 = tpu.dynamic_rotate %121 by %c240_i32_72 dim 1 : vector<4x256xf32>, i32 -> vector<4x256xf32>
    %c68 = arith.constant 68 : index
    %c0_73 = arith.constant 0 : index
    %126 = vector.load %arg8[%c68, %c0_73] : memref<112x256xf32, #tpu.memory_space<vmem>>, vector<4x256xf32>
    tpu.vector_store %arg8[%c68, %c0_73], %125 {strides = array<i32>} : memref<112x256xf32, #tpu.memory_space<vmem>>, vector<4x256xf32>,
    %c2_i32 = arith.constant 2 : i32
    %127 = arith.addi %arg1, %c2_i32 : i32
    %c4_i32_74 = arith.constant 4 : i32
    %c0_i32_75 = arith.constant 0 : i32
    %128 = arith.cmpi eq, %c4_i32_74, %c0_i32_75 : i32
    %c1_i32_76 = arith.constant 1 : i32
    %129 = arith.select %128, %c1_i32_76, %c4_i32_74 : i32
    %130 = arith.remsi %127, %129 : i32
    %c0_i32_77 = arith.constant 0 : i32
    %131 = arith.cmpi ne, %130, %c0_i32_77 : i32
    %c0_i32_78 = arith.constant 0 : i32
    %132 = arith.cmpi slt, %130, %c0_i32_78 : i32
    %c0_i32_79 = arith.constant 0 : i32
    %133 = arith.cmpi slt, %129, %c0_i32_79 : i32
    %134 = arith.xori %132, %133 : i1
    %135 = arith.andi %134, %131 : i1
    %136 = arith.addi %130, %129 : i32
    %137 = arith.select %135, %136, %130 : i32
    %138 = arith.index_cast %137 : i32 to index
    %c0_80 = arith.constant 0 : index
    %c0_81 = arith.constant 0 : index
    %139 = vector.load %arg6[%138, %c0_80, %c0_81] : memref<4x4x256xf32, #tpu.memory_space<vmem>>, vector<1x4x256xf32>
    %140 = vector.shape_cast %139 : vector<1x4x256xf32> to vector<4x256xf32>
    %c1_i32_82 = arith.constant 1 : i32
    %141 = tpu.dynamic_rotate %140 by %c1_i32_82 dim 1 : vector<4x256xf32>, i32 -> vector<4x256xf32>
    %c241_i32_83 = arith.constant 241 : i32
    %142 = tpu.dynamic_rotate %140 by %c241_i32_83 dim 1 : vector<4x256xf32>, i32 -> vector<4x256xf32>
    %143 = vector.shape_cast %46 : vector<1x256xi1> to vector<1x256xi1>
    %144 = vector.broadcast %143 : vector<1x256xi1> to vector<4x256xi1>
    %145 = arith.select %144, %142, %141 : vector<4x256xi1>, vector<4x256xf32>
    %c16_i32_84 = arith.constant 16 : i32
    %146 = tpu.dynamic_rotate %145 by %c16_i32_84 dim 1 : vector<4x256xf32>, i32 -> vector<4x256xf32>
    %c72 = arith.constant 72 : index
    %c0_85 = arith.constant 0 : index
    %147 = vector.load %arg8[%c72, %c0_85] : memref<112x256xf32, #tpu.memory_space<vmem>>, vector<4x256xf32>
    tpu.vector_store %arg8[%c72, %c0_85], %146 {strides = array<i32>} : memref<112x256xf32, #tpu.memory_space<vmem>>, vector<4x256xf32>,
    %c84 = arith.constant 84 : index
    %c0_86 = arith.constant 0 : index
    %148 = vector.load %arg8[%c84, %c0_86] : memref<112x256xf32, #tpu.memory_space<vmem>>, vector<4x256xf32>
    tpu.vector_store %arg8[%c84, %c0_86], %145 {strides = array<i32>} : memref<112x256xf32, #tpu.memory_space<vmem>>, vector<4x256xf32>,
    %c240_i32_87 = arith.constant 240 : i32
    %149 = tpu.dynamic_rotate %145 by %c240_i32_87 dim 1 : vector<4x256xf32>, i32 -> vector<4x256xf32>
    %c96 = arith.constant 96 : index
    %c0_88 = arith.constant 0 : index
    %150 = vector.load %arg8[%c96, %c0_88] : memref<112x256xf32, #tpu.memory_space<vmem>>, vector<4x256xf32>
    tpu.vector_store %arg8[%c96, %c0_88], %149 {strides = array<i32>} : memref<112x256xf32, #tpu.memory_space<vmem>>, vector<4x256xf32>,
    %c16_i32_89 = arith.constant 16 : i32
    %151 = tpu.dynamic_rotate %140 by %c16_i32_89 dim 1 : vector<4x256xf32>, i32 -> vector<4x256xf32>
    %c76 = arith.constant 76 : index
    %c0_90 = arith.constant 0 : index
    %152 = vector.load %arg8[%c76, %c0_90] : memref<112x256xf32, #tpu.memory_space<vmem>>, vector<4x256xf32>
    tpu.vector_store %arg8[%c76, %c0_90], %151 {strides = array<i32>} : memref<112x256xf32, #tpu.memory_space<vmem>>, vector<4x256xf32>,
    %c88 = arith.constant 88 : index
    %c0_91 = arith.constant 0 : index
    %153 = vector.load %arg8[%c88, %c0_91] : memref<112x256xf32, #tpu.memory_space<vmem>>, vector<4x256xf32>
    tpu.vector_store %arg8[%c88, %c0_91], %140 {strides = array<i32>} : memref<112x256xf32, #tpu.memory_space<vmem>>, vector<4x256xf32>,
    %c240_i32_92 = arith.constant 240 : i32
    %154 = tpu.dynamic_rotate %140 by %c240_i32_92 dim 1 : vector<4x256xf32>, i32 -> vector<4x256xf32>
    %c100 = arith.constant 100 : index
    %c0_93 = arith.constant 0 : index
    %155 = vector.load %arg8[%c100, %c0_93] : memref<112x256xf32, #tpu.memory_space<vmem>>, vector<4x256xf32>
    tpu.vector_store %arg8[%c100, %c0_93], %154 {strides = array<i32>} : memref<112x256xf32, #tpu.memory_space<vmem>>, vector<4x256xf32>,
    %c15_i32_94 = arith.constant 15 : i32
    %156 = tpu.dynamic_rotate %140 by %c15_i32_94 dim 1 : vector<4x256xf32>, i32 -> vector<4x256xf32>
    %c255_i32_95 = arith.constant 255 : i32
    %157 = tpu.dynamic_rotate %140 by %c255_i32_95 dim 1 : vector<4x256xf32>, i32 -> vector<4x256xf32>
    %158 = vector.shape_cast %48 : vector<1x256xi1> to vector<1x256xi1>
    %159 = vector.broadcast %158 : vector<1x256xi1> to vector<4x256xi1>
    %160 = arith.select %159, %157, %156 : vector<4x256xi1>, vector<4x256xf32>
    %c16_i32_96 = arith.constant 16 : i32
    %161 = tpu.dynamic_rotate %160 by %c16_i32_96 dim 1 : vector<4x256xf32>, i32 -> vector<4x256xf32>
    %c80 = arith.constant 80 : index
    %c0_97 = arith.constant 0 : index
    %162 = vector.load %arg8[%c80, %c0_97] : memref<112x256xf32, #tpu.memory_space<vmem>>, vector<4x256xf32>
    tpu.vector_store %arg8[%c80, %c0_97], %161 {strides = array<i32>} : memref<112x256xf32, #tpu.memory_space<vmem>>, vector<4x256xf32>,
    %c92 = arith.constant 92 : index
    %c0_98 = arith.constant 0 : index
    %163 = vector.load %arg8[%c92, %c0_98] : memref<112x256xf32, #tpu.memory_space<vmem>>, vector<4x256xf32>
    tpu.vector_store %arg8[%c92, %c0_98], %160 {strides = array<i32>} : memref<112x256xf32, #tpu.memory_space<vmem>>, vector<4x256xf32>,
    %c240_i32_99 = arith.constant 240 : i32
    %164 = tpu.dynamic_rotate %160 by %c240_i32_99 dim 1 : vector<4x256xf32>, i32 -> vector<4x256xf32>
    %c104 = arith.constant 104 : index
    %c0_100 = arith.constant 0 : index
    %165 = vector.load %arg8[%c104, %c0_100] : memref<112x256xf32, #tpu.memory_space<vmem>>, vector<4x256xf32>
    tpu.vector_store %arg8[%c104, %c0_100], %164 {strides = array<i32>} : memref<112x256xf32, #tpu.memory_space<vmem>>, vector<4x256xf32>,
    %c0_101 = arith.constant 0 : index
    %c0_102 = arith.constant 0 : index
    %166 = vector.load %arg3[%c0_101, %c0_102] : memref<8x112xf32, #tpu.memory_space<vmem>>, vector<8x112xf32>
    %c0_103 = arith.constant 0 : index
    %c0_104 = arith.constant 0 : index
    %167 = vector.load %arg8[%c0_103, %c0_104] : memref<112x256xf32, #tpu.memory_space<vmem>>, vector<112x256xf32>
    %cst = arith.constant dense<0.000000e+00> : vector<8x256xf32>
    %168 = tpu.matmul %166, %167, %cst {dimension_numbers = #tpu.dot_dimension_numbers<[1], [0], [0], [1], [0, 0, 1, 1], [], []>} : vector<8x112xf32>, vector<112x256xf32>, vector<8x256xf32> -> vector<8x256xf32>
    %c0_105 = arith.constant 0 : index
    %c0_106 = arith.constant 0 : index
    %169 = vector.load %arg4[%c0_105, %c0_106] : memref<8x1xf32, #tpu.memory_space<vmem>>, vector<8x1xf32>
    %170 = vector.broadcast %169 : vector<8x1xf32> to vector<8x256xf32>
    %171 = arith.addf %168, %170 : vector<8x256xf32>
    %172 = vector.shape_cast %171 : vector<8x256xf32> to vector<1x8x256xf32>
    %c0_107 = arith.constant 0 : index
    %c0_108 = arith.constant 0 : index
    %c0_109 = arith.constant 0 : index
    %173 = vector.load %arg5[%c0_107, %c0_108, %c0_109] : memref<1x8x256xf32, #tpu.memory_space<vmem>>, vector<1x8x256xf32>
    tpu.vector_store %arg5[%c0_107, %c0_108, %c0_109], %172 {strides = array<i32>} : memref<1x8x256xf32, #tpu.memory_space<vmem>>, vector<1x8x256xf32>,
    return
  }
  func.func @transform_1(%arg0: i32, %arg1: i32) -> (i32, i32) {
    %c0_i32 = arith.constant 0 : i32
    %c0_i32_0 = arith.constant 0 : i32
    %c0_i32_1 = arith.constant 0 : i32
    return %c0_i32, %c0_i32_0 : i32, i32
  }
  func.func @transform_2(%arg0: i32, %arg1: i32) -> (i32, i32) {
    %c0_i32 = arith.constant 0 : i32
    %c0_i32_0 = arith.constant 0 : i32
    %c0_i32_1 = arith.constant 0 : i32
    return %c0_i32, %c0_i32_0 : i32, i32
  }
  func.func @transform_3(%arg0: i32, %arg1: i32) -> (i32, i32, i32) {
    %c0_i32 = arith.constant 0 : i32
    %c0_i32_0 = arith.constant 0 : i32
    return %arg0, %c0_i32, %arg1 : i32, i32, i32
  }
}

</mosaic_0001>

<llo_original>
// kernel: circular_conv3d.1
$region0: #{circular_conv3d.1}
  #allocation0 [shape = 'u32[]', space=smem, size = 0x4, offset = 0x4, fixed_abs, tag = 'smem constant byte address 0x4 - core index']
  #allocation1 [shape = 'u32[144,128]{1,0:T(1,128)}', space=vmem, size = 0x12000, scoped, tag = 'internal scratch']
  #allocation2 [shape = 'f32[4,4,256]{2,1,0:T(4,128)}', space=vmem, size = 0x4000, scoped, tag = 'scratch operand']
  #allocation3 [shape = 's32[4]{0}', space=sflag, size = 0x10, scoped, tag = 'scratch operand']
  #allocation4 [shape = 'f32[112,256]{1,0:T(8,128)}', space=vmem, size = 0x1c000, scoped, tag = 'scratch operand']
  #allocation5 [shape = 's32[]', space=sflag, size = 0x4, offset = 0, fixed_abs, tag = 'sflag constant byte address 0x0 - dummy sync flag']
  #allocation6 [shape = 's32[]', space=sflag, size = 0x4, offset = 0, fixed_abs, tag = 'sflag constant byte address 0x0 - dummy sync flag']
  #allocation7 [shape = 's32[]', space=sflag, size = 0x4, offset = 0, fixed_abs, tag = 'sflag constant byte address 0x0 - dummy sync flag']
  #allocation8 [shape = 's32[]', space=sflag, size = 0x4, offset = 0, fixed_abs, tag = 'sflag constant byte address 0x0 - dummy sync flag']
  %s0 = inlined_call_operand.vmem [shape: f32[2,4,8,256], index: 0, kind: input, shape index: {}]
  %s1 = inlined_call_operand.vmem [shape: f32[8,112], index: 1, kind: input, shape index: {}]
  %s2 = inlined_call_operand.vmem [shape: f32[8,1], index: 2, kind: input, shape index: {}]
  %s3 = inlined_call_operand.vmem [shape: f32[2,8,2048], index: 3, kind: output, shape index: {}]
  %s4 = sld [smem:[#allocation0]]
  $region201: #{circular_conv3d.1} parent=0
    _
  %s6 = ssub.s32 1, %s4
  %s7 = scalar_select 0, %s6, %s4
  loop: start=0, step=1, limit=18
  $region2: #{circular_conv3d.1} parent=0 // loop_pre_header
    _
  $region3: #{circular_conv3d.1} parent=0 // loop_header
    %s9 = sphi 0, %s13
    %p10 = scmp.ge.s32.totalorder %s9, 18
    %s16 = sphi 0, %s28
    %s17 = sphi 0, %s24
    %s18 = sphi 0, %s16
    %s19 = sphi 0, %s17
    %s20 = sphi 0, %s18
    %s21 = sphi 0, %s19
    %s29 = sphi 0, %s29
    %s31 = sphi 0, %s29
    %s32 = sphi 0, %s31
    %s46 = sphi 0, %s32
    %s50 = sphi 0, %s50
    %s52 = sphi 0, %s50
    %s53 = sphi 0, %s52
    %s67 = sphi 0, %s53
    %s75 = sphi 0, %s77
    %s78 = sphi 0, %s75
    %s79 = sphi 0, %s78
    %s95 = sphi 0, %s79
  $region4: #{circular_conv3d.1} parent=0 // loop_header_branch
    %12 = sbr.rel (%p10) target = $region8
  $region5: #{circular_conv3d.1} parent=0 // loop_body
    %s14 = ssub.s32 %s9, 1
    %s15 = ssub.s32 %s9, 2
    %s22 = sadd.s32 1, %s17
    %p23 = scmp.ge.s32.totalorder %s22, 8
    %s24 = scalar_select %p23, 0, %s22
    %s25 = sadd.s32 1, %s16
    %s26 = scalar_select %p23, %s25, %s16
    %p27 = scmp.ge.s32.totalorder %s26, 2
    %s28 = scalar_select %p27, 0, %s26
    %s30 = sadd.s32 %s29, 1
    %p33 = scmp.eq.s32.totalorder %s9, 15
    %p34 = scmp.ne.s32.totalorder %s29, %s31
    %p35 = scmp.eq.s32.totalorder %s9, 0
    %p36 = por %p34, %p35
    %p37 = scmp.ne.s32.totalorder %s29, %s31
    %p38 = scmp.eq.s32.totalorder %s14, 15
    %p39 = por %p37, %p38
    %p40 = scmp.ne.s32.totalorder %s31, %s32
    %p41 = scmp.eq.s32.totalorder %s14, 0
    %p42 = por %p40, %p41
    %p43 = scmp.ne.s32.totalorder %s31, %s32
    %p44 = scmp.eq.s32.totalorder %s15, 15
    %p45 = por %p43, %p44
    %p47 = scmp.ne.s32.totalorder %s32, %s46
    %p48 = scmp.eq.s32.totalorder %s15, 0
    %p49 = por %p47, %p48
    %s51 = sadd.s32 %s50, 1
    %p54 = scmp.eq.s32.totalorder %s9, 15
    %p55 = scmp.ne.s32.totalorder %s50, %s52
    %p56 = scmp.eq.s32.totalorder %s9, 0
    %p57 = por %p55, %p56
    %p58 = scmp.ne.s32.totalorder %s50, %s52
    %p59 = scmp.eq.s32.totalorder %s14, 15
    %p60 = por %p58, %p59
    %p61 = scmp.ne.s32.totalorder %s52, %s53
    %p62 = scmp.eq.s32.totalorder %s14, 0
    %p63 = por %p61, %p62
    %p64 = scmp.ne.s32.totalorder %s52, %s53
    %p65 = scmp.eq.s32.totalorder %s15, 15
    %p66 = por %p64, %p65
    %p68 = scmp.ne.s32.totalorder %s53, %s67
    %p69 = scmp.eq.s32.totalorder %s15, 0
    %p70 = por %p68, %p69
    %s71 = ssub.s32 %s16, %s28
    %s72 = ssub.s32 %s17, %s24
    %s73 = sor.u32 %s71, %s72
    %p74 = scmp.eq.s32.totalorder %s73, 0
    %s76 = sadd.s32 %s75, 1
    %s77 = scalar_select %p74, %s75, %s76
    %p80 = pneg %p74
    %p81 = scmp.eq.s32.totalorder %s9, 15
    %p82 = por %p80, %p81
    %p83 = scmp.ne.s32.totalorder %s75, %s78
    %p84 = scmp.eq.s32.totalorder %s9, 0
    %p85 = por %p83, %p84
    %p86 = scmp.ne.s32.totalorder %s75, %s78
    %p87 = scmp.eq.s32.totalorder %s14, 15
    %p88 = por %p86, %p87
    %p89 = scmp.ne.s32.totalorder %s78, %s79
    %p90 = scmp.eq.s32.totalorder %s14, 0
    %p91 = por %p89, %p90
    %p92 = scmp.ne.s32.totalorder %s78, %s79
    %p93 = scmp.eq.s32.totalorder %s15, 15
    %p94 = por %p92, %p93
    %p96 = scmp.ne.s32.totalorder %s79, %s95
    %p97 = scmp.eq.s32.totalorder %s15, 0
    %p98 = por %p96, %p97
    %p99 = scmp.le.s32.totalorder 1, %s9
    %p100 = scmp.lt.s32.totalorder %s9, 17
    %p101 = pnand %p99, %p100
    %p102 = pneg %p101
    // Predicated region
    $region9: #{circular_conv3d.1} parent=5 // pred_check
      _
    $region10: #{circular_conv3d.1} parent=5 // pred_check_branch
      %104 = sbr.rel (%p101) target = $region12
    $region11: #{circular_conv3d.1} parent=5 // pred_region
      %s105 = ssub.s32 %s9, 1
      // Predicated region
      $region13: #{circular_conv3d.1} parent=11 // pred_check
        %p106 = pneg %p42
      $region14: #{circular_conv3d.1} parent=11 // pred_check_branch
        %108 = sbr.rel (%p106) target = $region16
      $region15: #{circular_conv3d.1} parent=11 // pred_region
        _
      $region16: #{circular_conv3d.1} parent=11 // pred_fallthru
        _
      // Predicated region
      $region17: #{circular_conv3d.1} parent=11 // pred_check
        %p109 = pneg %p63
      $region18: #{circular_conv3d.1} parent=11 // pred_check_branch
        %111 = sbr.rel (%p109) target = $region20
      $region19: #{circular_conv3d.1} parent=11 // pred_region
        _
      $region20: #{circular_conv3d.1} parent=11 // pred_fallthru
        _
    $region12: #{circular_conv3d.1} parent=5 // pred_fallthru
      _
    %p112 = scmp.lt.s32.totalorder %s9, 16
    // Predicated region
    $region21: #{circular_conv3d.1} parent=5 // pred_check
      %p113 = pneg %p112
    $region22: #{circular_conv3d.1} parent=5 // pred_check_branch
      %115 = sbr.rel (%p113) target = $region24
    $region23: #{circular_conv3d.1} parent=5 // pred_region
      _
    $region24: #{circular_conv3d.1} parent=5 // pred_fallthru
      _
    %p116 = scmp.le.s32.totalorder 1, %s9
    %p117 = scmp.lt.s32.totalorder %s9, 17
    %p118 = pnand %p116, %p117
    %p119 = pneg %p118
    // Predicated region
    $region25: #{circular_conv3d.1} parent=5 // pred_check
      _
    $region26: #{circular_conv3d.1} parent=5 // pred_check_branch
      %121 = sbr.rel (%p118) target = $region28
    $region27: #{circular_conv3d.1} parent=5 // pred_region
      %s122 = ssub.s32 %s9, 1
      %p123 = pneg %p42
      %p124 = pneg %p39
      %p125 = pneg %p63
      %p126 = pneg %p60
      %p127 = pneg %p91
      %p128 = pneg %p88
      %s129 = smul.u32 2, %s19
      %p130 = scmp.lt.s32.totalorder %s18, 1
      %s131 = scalar_select %p130, %s18, 1
      %p132 = scmp.lt.s32.totalorder %s129, 15
      %s133 = scalar_select %p132, %s129, 15
      %s134 = smul.addr %s131, 16
      %s135 = sadd.s32 %s133, %s134
      %s136 = smul.addr %s135, 8
      %s137 = scalar_lea.vmem %s3, %s136
      %s138 = smul.u32 2, %s19
      %p139 = scmp.lt.s32.totalorder %s18, 1
      %s140 = scalar_select %p139, %s18, 1
      %p141 = scmp.lt.s32.totalorder %s138, 15
      %s142 = scalar_select %p141, %s138, 15
      %s143 = smul.addr %s140, 16
      %s144 = sadd.s32 %s142, %s143
      %s145 = smul.addr %s144, 8
      %s146 = scalar_lea.vmem %s3, %s145
      %s147 = smul.u32 2, %s19
      %p148 = scmp.eq.s32.totalorder %s19, 0
      // Predicated region
      $region29: #{circular_conv3d.1} parent=27 // pred_check
        %p149 = pneg %p148
      $region30: #{circular_conv3d.1} parent=27 // pred_check_branch
        %151 = sbr.rel (%p149) target = $region32
      $region31: #{circular_conv3d.1} parent=27 // pred_region
        %s152 = smul.u32 %s18, 64
        %s153 = sadd.s32 7, %s152
        %s154 = scalar_lea.vmem %s0, %s153
        %p156 = scmp.lt.u32.totalorder 1, 8
        %p157 = pneg %p156
        // Predicated region
        $region33: #{circular_conv3d.1} parent=31 // pred_check
          _
        $region34: #{circular_conv3d.1} parent=31 // pred_check_branch
          %159 = sbr.rel (%p156) target = $region36
        $region35: #{circular_conv3d.1} parent=31 // pred_region
          %s188 = sand.u32 1, 7
          %p189 = scmp.eq.s32.totalorder %s188, 0
          %p190 = pneg %p189
          // Predicated region
          $region48: #{circular_conv3d.1} parent=35 // pred_check
            _
          $region49: #{circular_conv3d.1} parent=35 // pred_check_branch
            %192 = sbr.rel (%p189) target = $region51
          $region50: #{circular_conv3d.1} parent=35 // pred_region
            %s193 = sand.u32 1, 7
            %s194 = ssub.s32 1, %s193
            %s195 = scalar_lea.vmem %s154, %s194
            %s196 = ssub.s32 1, %s193
            %s197 = scalar_lea.vmem [#allocation2], %s196
            loop: start=0, step=1, limit=1
            $region52: #{circular_conv3d.1} parent=50 // loop_pre_header
              _
            $region53: #{circular_conv3d.1} parent=50 // loop_header
              %s199 = sphi 0, %s203
              %p200 = scmp.ge.s32.totalorder %s199, 1
              %s204 = sphi %s154, %s154
              %s205 = sphi [#allocation2], [#allocation2]
            $region54: #{circular_conv3d.1} parent=50 // loop_header_branch
              %202 = sbr.rel (%p200) target = $region58
            $region55: #{circular_conv3d.1} parent=50 // loop_body
              _
            $region56: #{circular_conv3d.1} parent=50 // loop_footer
              %s203 = sadd.s32 1, %s199
            $region57: #{circular_conv3d.1} parent=50 // loop_footer_branch
              %198 = sbr.rel target = $region53
            $region58: #{circular_conv3d.1} parent=50 // loop_exit
              _
            %s206 = sshllo.u32 0, %s193
            loop: start=0, step=1, limit=1
            $region59: #{circular_conv3d.1} parent=50 // loop_pre_header
              _
            $region60: #{circular_conv3d.1} parent=50 // loop_header
              %s208 = sphi 0, %s212
              %p209 = scmp.ge.s32.totalorder %s208, 1
              %s213 = sphi %s195, %s195
              %s214 = sphi %s197, %s197
            $region61: #{circular_conv3d.1} parent=50 // loop_header_branch
              %211 = sbr.rel (%p209) target = $region65
            $region62: #{circular_conv3d.1} parent=50 // loop_body
              %v215 = vld [vmem:[%s213] sm:%s206]
              %216 = vst [vmem:[%s214] sm:%s206] %v215
              %v217 = vld [vmem:[%s213 + $0x10] sm:%s206]
              %218 = vst [vmem:[%s214 + $0x1] sm:%s206] %v217
              %v219 = vld [vmem:[%s213 + $0x20] sm:%s206]
              %220 = vst [vmem:[%s214 + $0x2] sm:%s206] %v219
              %v221 = vld [vmem:[%s213 + $0x30] sm:%s206]
              %222 = vst [vmem:[%s214 + $0x3] sm:%s206] %v221
              %v223 = vld [vmem:[%s213 + $0x8] sm:%s206]
              %224 = vst [vmem:[%s214 + $0x4] sm:%s206] %v223
              %v225 = vld [vmem:[%s213 + $0x18] sm:%s206]
              %226 = vst [vmem:[%s214 + $0x5] sm:%s206] %v225
              %v227 = vld [vmem:[%s213 + $0x28] sm:%s206]
              %228 = vst [vmem:[%s214 + $0x6] sm:%s206] %v227
              %v229 = vld [vmem:[%s213 + $0x38] sm:%s206]
              %230 = vst [vmem:[%s214 + $0x7] sm:%s206] %v229
            $region63: #{circular_conv3d.1} parent=50 // loop_footer
              %s212 = sadd.s32 1, %s208
            $region64: #{circular_conv3d.1} parent=50 // loop_footer_branch
              %207 = sbr.rel target = $region60
            $region65: #{circular_conv3d.1} parent=50 // loop_exit
              _
          $region51: #{circular_conv3d.1} parent=35 // pred_fallthru
            _
        $region36: #{circular_conv3d.1} parent=31 // pred_fallthru
          _
        // Predicated region
        $region37: #{circular_conv3d.1} parent=31 // pred_check
          %p160 = pneg %p156
        $region38: #{circular_conv3d.1} parent=31 // pred_check_branch
          %162 = sbr.rel (%p160) target = $region40
        $region39: #{circular_conv3d.1} parent=31 // pred_region
          %s163 = sshllo.u32 0, 1
          loop: start=0, step=1, limit=1
          $region41: #{circular_conv3d.1} parent=39 // loop_pre_header
            _
          $region42: #{circular_conv3d.1} parent=39 // loop_header
            %s165 = sphi 0, %s169
            %p166 = scmp.ge.s32.totalorder %s165, 1
            %s170 = sphi %s154, %s154
            %s171 = sphi [#allocation2], [#allocation2]
          $region43: #{circular_conv3d.1} parent=39 // loop_header_branch
            %168 = sbr.rel (%p166) target = $region47
          $region44: #{circular_conv3d.1} parent=39 // loop_body
            %v172 = vld [vmem:[%s170] sm:%s163]
            %173 = vst [vmem:[%s171] sm:%s163] %v172
            %v174 = vld [vmem:[%s170 + $0x10] sm:%s163]
            %175 = vst [vmem:[%s171 + $0x1] sm:%s163] %v174
            %v176 = vld [vmem:[%s170 + $0x20] sm:%s163]
            %177 = vst [vmem:[%s171 + $0x2] sm:%s163] %v176
            %v178 = vld [vmem:[%s170 + $0x30] sm:%s163]
            %179 = vst [vmem:[%s171 + $0x3] sm:%s163] %v178
            %v180 = vld [vmem:[%s170 + $0x8] sm:%s163]
            %181 = vst [vmem:[%s171 + $0x4] sm:%s163] %v180
            %v182 = vld [vmem:[%s170 + $0x18] sm:%s163]
            %183 = vst [vmem:[%s171 + $0x5] sm:%s163] %v182
            %v184 = vld [vmem:[%s170 + $0x28] sm:%s163]
            %185 = vst [vmem:[%s171 + $0x6] sm:%s163] %v184
            %v186 = vld [vmem:[%s170 + $0x38] sm:%s163]
            %187 = vst [vmem:[%s171 + $0x7] sm:%s163] %v186
          $region45: #{circular_conv3d.1} parent=39 // loop_footer
            %s169 = sadd.s32 1, %s165
          $region46: #{circular_conv3d.1} parent=39 // loop_footer_branch
            %164 = sbr.rel target = $region42
          $region47: #{circular_conv3d.1} parent=39 // loop_exit
            _
        $region40: #{circular_conv3d.1} parent=31 // pred_fallthru
          _
        // Predicated region
        $region66: #{circular_conv3d.1} parent=31 // pred_check
          _
        $region67: #{circular_conv3d.1} parent=31 // pred_check_branch
          %233 = sbr.rel (0) target = $region69
        $region68: #{circular_conv3d.1} parent=31 // pred_region
          %234 = vsyncadd [#allocation3], 128
        $region69: #{circular_conv3d.1} parent=31 // pred_fallthru
          _
        %s235 = scalar_lea.vmem %s0, %s152
        %s236 = scalar_lea.vmem [#allocation2], 8
        %s237 = scalar_lea.sflag [#allocation3], 1
        %p239 = scmp.lt.u32.totalorder 1, 8
        %p240 = pneg %p239
        // Predicated region
        $region70: #{circular_conv3d.1} parent=31 // pred_check
          _
        $region71: #{circular_conv3d.1} parent=31 // pred_check_branch
          %242 = sbr.rel (%p239) target = $region73
        $region72: #{circular_conv3d.1} parent=31 // pred_region
          %s271 = sand.u32 1, 7
          %p272 = scmp.eq.s32.totalorder %s271, 0
          %p273 = pneg %p272
          // Predicated region
          $region85: #{circular_conv3d.1} parent=72 // pred_check
            _
          $region86: #{circular_conv3d.1} parent=72 // pred_check_branch
            %275 = sbr.rel (%p272) target = $region88
          $region87: #{circular_conv3d.1} parent=72 // pred_region
            %s276 = sand.u32 1, 7
            %s277 = ssub.s32 1, %s276
            %s278 = scalar_lea.vmem %s235, %s277
            %s279 = ssub.s32 1, %s276
            %s280 = scalar_lea.vmem %s236, %s279 [#allocation2]
            loop: start=0, step=1, limit=1
            $region89: #{circular_conv3d.1} parent=87 // loop_pre_header
              _
            $region90: #{circular_conv3d.1} parent=87 // loop_header
              %s282 = sphi 0, %s286
              %p283 = scmp.ge.s32.totalorder %s282, 1
              %s287 = sphi %s235, %s235
              %s288 = sphi %s236, %s236
            $region91: #{circular_conv3d.1} parent=87 // loop_header_branch
              %285 = sbr.rel (%p283) target = $region95
            $region92: #{circular_conv3d.1} parent=87 // loop_body
              _
            $region93: #{circular_conv3d.1} parent=87 // loop_footer
              %s286 = sadd.s32 1, %s282
            $region94: #{circular_conv3d.1} parent=87 // loop_footer_branch
              %281 = sbr.rel target = $region90
            $region95: #{circular_conv3d.1} parent=87 // loop_exit
              _
            %s289 = sshllo.u32 0, %s276
            loop: start=0, step=1, limit=1
            $region96: #{circular_conv3d.1} parent=87 // loop_pre_header
              _
            $region97: #{circular_conv3d.1} parent=87 // loop_header
              %s291 = sphi 0, %s295
              %p292 = scmp.ge.s32.totalorder %s291, 1
              %s296 = sphi %s278, %s278
              %s297 = sphi %s280, %s280
            $region98: #{circular_conv3d.1} parent=87 // loop_header_branch
              %294 = sbr.rel (%p292) target = $region102
            $region99: #{circular_conv3d.1} parent=87 // loop_body
              %v298 = vld [vmem:[%s296] sm:%s289]
              %299 = vst [vmem:[%s297] sm:%s289] %v298
              %v300 = vld [vmem:[%s296 + $0x10] sm:%s289]
              %301 = vst [vmem:[%s297 + $0x1] sm:%s289] %v300
              %v302 = vld [vmem:[%s296 + $0x20] sm:%s289]
              %303 = vst [vmem:[%s297 + $0x2] sm:%s289] %v302
              %v304 = vld [vmem:[%s296 + $0x30] sm:%s289]
              %305 = vst [vmem:[%s297 + $0x3] sm:%s289] %v304
              %v306 = vld [vmem:[%s296 + $0x8] sm:%s289]
              %307 = vst [vmem:[%s297 + $0x4] sm:%s289] %v306
              %v308 = vld [vmem:[%s296 + $0x18] sm:%s289]
              %309 = vst [vmem:[%s297 + $0x5] sm:%s289] %v308
              %v310 = vld [vmem:[%s296 + $0x28] sm:%s289]
              %311 = vst [vmem:[%s297 + $0x6] sm:%s289] %v310
              %v312 = vld [vmem:[%s296 + $0x38] sm:%s289]
              %313 = vst [vmem:[%s297 + $0x7] sm:%s289] %v312
            $region100: #{circular_conv3d.1} parent=87 // loop_footer
              %s295 = sadd.s32 1, %s291
            $region101: #{circular_conv3d.1} parent=87 // loop_footer_branch
              %290 = sbr.rel target = $region97
            $region102: #{circular_conv3d.1} parent=87 // loop_exit
              _
          $region88: #{circular_conv3d.1} parent=72 // pred_fallthru
            _
        $region73: #{circular_conv3d.1} parent=31 // pred_fallthru
          _
        // Predicated region
        $region74: #{circular_conv3d.1} parent=31 // pred_check
          %p243 = pneg %p239
        $region75: #{circular_conv3d.1} parent=31 // pred_check_branch
          %245 = sbr.rel (%p243) target = $region77
        $region76: #{circular_conv3d.1} parent=31 // pred_region
          %s246 = sshllo.u32 0, 1
          loop: start=0, step=1, limit=1
          $region78: #{circular_conv3d.1} parent=76 // loop_pre_header
            _
          $region79: #{circular_conv3d.1} parent=76 // loop_header
            %s248 = sphi 0, %s252
            %p249 = scmp.ge.s32.totalorder %s248, 1
            %s253 = sphi %s235, %s235
            %s254 = sphi %s236, %s236
          $region80: #{circular_conv3d.1} parent=76 // loop_header_branch
            %251 = sbr.rel (%p249) target = $region84
          $region81: #{circular_conv3d.1} parent=76 // loop_body
            %v255 = vld [vmem:[%s253] sm:%s246]
            %256 = vst [vmem:[%s254] sm:%s246] %v255
            %v257 = vld [vmem:[%s253 + $0x10] sm:%s246]
            %258 = vst [vmem:[%s254 + $0x1] sm:%s246] %v257
            %v259 = vld [vmem:[%s253 + $0x20] sm:%s246]
            %260 = vst [vmem:[%s254 + $0x2] sm:%s246] %v259
            %v261 = vld [vmem:[%s253 + $0x30] sm:%s246]
            %262 = vst [vmem:[%s254 + $0x3] sm:%s246] %v261
            %v263 = vld [vmem:[%s253 + $0x8] sm:%s246]
            %264 = vst [vmem:[%s254 + $0x4] sm:%s246] %v263
            %v265 = vld [vmem:[%s253 + $0x18] sm:%s246]
            %266 = vst [vmem:[%s254 + $0x5] sm:%s246] %v265
            %v267 = vld [vmem:[%s253 + $0x28] sm:%s246]
            %268 = vst [vmem:[%s254 + $0x6] sm:%s246] %v267
            %v269 = vld [vmem:[%s253 + $0x38] sm:%s246]
            %270 = vst [vmem:[%s254 + $0x7] sm:%s246] %v269
          $region82: #{circular_conv3d.1} parent=76 // loop_footer
            %s252 = sadd.s32 1, %s248
          $region83: #{circular_conv3d.1} parent=76 // loop_footer_branch
            %247 = sbr.rel target = $region79
          $region84: #{circular_conv3d.1} parent=76 // loop_exit
            _
        $region77: #{circular_conv3d.1} parent=31 // pred_fallthru
          _
        // Predicated region
        $region103: #{circular_conv3d.1} parent=31 // pred_check
          _
        $region104: #{circular_conv3d.1} parent=31 // pred_check_branch
          %316 = sbr.rel (0) target = $region106
        $region105: #{circular_conv3d.1} parent=31 // pred_region
          %317 = vsyncadd %s237, 128
        $region106: #{circular_conv3d.1} parent=31 // pred_fallthru
          _
        %s318 = sadd.s32 1, %s152
        %s319 = scalar_lea.vmem %s0, %s318
        %s320 = scalar_lea.vmem [#allocation2], 16
        %s321 = scalar_lea.sflag [#allocation3], 2
        %p323 = scmp.lt.u32.totalorder 1, 8
        %p324 = pneg %p323
        // Predicated region
        $region107: #{circular_conv3d.1} parent=31 // pred_check
          _
        $region108: #{circular_conv3d.1} parent=31 // pred_check_branch
          %326 = sbr.rel (%p323) target = $region110
        $region109: #{circular_conv3d.1} parent=31 // pred_region
          %s355 = sand.u32 1, 7
          %p356 = scmp.eq.s32.totalorder %s355, 0
          %p357 = pneg %p356
          // Predicated region
          $region122: #{circular_conv3d.1} parent=109 // pred_check
            _
          $region123: #{circular_conv3d.1} parent=109 // pred_check_branch
            %359 = sbr.rel (%p356) target = $region125
          $region124: #{circular_conv3d.1} parent=109 // pred_region
            %s360 = sand.u32 1, 7
            %s361 = ssub.s32 1, %s360
            %s362 = scalar_lea.vmem %s319, %s361
            %s363 = ssub.s32 1, %s360
            %s364 = scalar_lea.vmem %s320, %s363 [#allocation2]
            loop: start=0, step=1, limit=1
            $region126: #{circular_conv3d.1} parent=124 // loop_pre_header
              _
            $region127: #{circular_conv3d.1} parent=124 // loop_header
              %s366 = sphi 0, %s370
              %p367 = scmp.ge.s32.totalorder %s366, 1
              %s371 = sphi %s319, %s319
              %s372 = sphi %s320, %s320
            $region128: #{circular_conv3d.1} parent=124 // loop_header_branch
              %369 = sbr.rel (%p367) target = $region132
            $region129: #{circular_conv3d.1} parent=124 // loop_body
              _
            $region130: #{circular_conv3d.1} parent=124 // loop_footer
              %s370 = sadd.s32 1, %s366
            $region131: #{circular_conv3d.1} parent=124 // loop_footer_branch
              %365 = sbr.rel target = $region127
            $region132: #{circular_conv3d.1} parent=124 // loop_exit
              _
            %s373 = sshllo.u32 0, %s360
            loop: start=0, step=1, limit=1
            $region133: #{circular_conv3d.1} parent=124 // loop_pre_header
              _
            $region134: #{circular_conv3d.1} parent=124 // loop_header
              %s375 = sphi 0, %s379
              %p376 = scmp.ge.s32.totalorder %s375, 1
              %s380 = sphi %s362, %s362
              %s381 = sphi %s364, %s364
            $region135: #{circular_conv3d.1} parent=124 // loop_header_branch
              %378 = sbr.rel (%p376) target = $region139
            $region136: #{circular_conv3d.1} parent=124 // loop_body
              %v382 = vld [vmem:[%s380] sm:%s373]
              %383 = vst [vmem:[%s381] sm:%s373] %v382
              %v384 = vld [vmem:[%s380 + $0x10] sm:%s373]
              %385 = vst [vmem:[%s381 + $0x1] sm:%s373] %v384
              %v386 = vld [vmem:[%s380 + $0x20] sm:%s373]
              %387 = vst [vmem:[%s381 + $0x2] sm:%s373] %v386
              %v388 = vld [vmem:[%s380 + $0x30] sm:%s373]
              %389 = vst [vmem:[%s381 + $0x3] sm:%s373] %v388
              %v390 = vld [vmem:[%s380 + $0x8] sm:%s373]
              %391 = vst [vmem:[%s381 + $0x4] sm:%s373] %v390
              %v392 = vld [vmem:[%s380 + $0x18] sm:%s373]
              %393 = vst [vmem:[%s381 + $0x5] sm:%s373] %v392
              %v394 = vld [vmem:[%s380 + $0x28] sm:%s373]
              %395 = vst [vmem:[%s381 + $0x6] sm:%s373] %v394
              %v396 = vld [vmem:[%s380 + $0x38] sm:%s373]
              %397 = vst [vmem:[%s381 + $0x7] sm:%s373] %v396
            $region137: #{circular_conv3d.1} parent=124 // loop_footer
              %s379 = sadd.s32 1, %s375
            $region138: #{circular_conv3d.1} parent=124 // loop_footer_branch
              %374 = sbr.rel target = $region134
            $region139: #{circular_conv3d.1} parent=124 // loop_exit
              _
          $region125: #{circular_conv3d.1} parent=109 // pred_fallthru
            _
        $region110: #{circular_conv3d.1} parent=31 // pred_fallthru
          _
        // Predicated region
        $region111: #{circular_conv3d.1} parent=31 // pred_check
          %p327 = pneg %p323
        $region112: #{circular_conv3d.1} parent=31 // pred_check_branch
          %329 = sbr.rel (%p327) target = $region114
        $region113: #{circular_conv3d.1} parent=31 // pred_region
          %s330 = sshllo.u32 0, 1
          loop: start=0, step=1, limit=1
          $region115: #{circular_conv3d.1} parent=113 // loop_pre_header
            _
          $region116: #{circular_conv3d.1} parent=113 // loop_header
            %s332 = sphi 0, %s336
            %p333 = scmp.ge.s32.totalorder %s332, 1
            %s337 = sphi %s319, %s319
            %s338 = sphi %s320, %s320
          $region117: #{circular_conv3d.1} parent=113 // loop_header_branch
            %335 = sbr.rel (%p333) target = $region121
          $region118: #{circular_conv3d.1} parent=113 // loop_body
            %v339 = vld [vmem:[%s337] sm:%s330]
            %340 = vst [vmem:[%s338] sm:%s330] %v339
            %v341 = vld [vmem:[%s337 + $0x10] sm:%s330]
            %342 = vst [vmem:[%s338 + $0x1] sm:%s330] %v341
            %v343 = vld [vmem:[%s337 + $0x20] sm:%s330]
            %344 = vst [vmem:[%s338 + $0x2] sm:%s330] %v343
            %v345 = vld [vmem:[%s337 + $0x30] sm:%s330]
            %346 = vst [vmem:[%s338 + $0x3] sm:%s330] %v345
            %v347 = vld [vmem:[%s337 + $0x8] sm:%s330]
            %348 = vst [vmem:[%s338 + $0x4] sm:%s330] %v347
            %v349 = vld [vmem:[%s337 + $0x18] sm:%s330]
            %350 = vst [vmem:[%s338 + $0x5] sm:%s330] %v349
            %v351 = vld [vmem:[%s337 + $0x28] sm:%s330]
            %352 = vst [vmem:[%s338 + $0x6] sm:%s330] %v351
            %v353 = vld [vmem:[%s337 + $0x38] sm:%s330]
            %354 = vst [vmem:[%s338 + $0x7] sm:%s330] %v353
          $region119: #{circular_conv3d.1} parent=113 // loop_footer
            %s336 = sadd.s32 1, %s332
          $region120: #{circular_conv3d.1} parent=113 // loop_footer_branch
            %331 = sbr.rel target = $region116
          $region121: #{circular_conv3d.1} parent=113 // loop_exit
            _
        $region114: #{circular_conv3d.1} parent=31 // pred_fallthru
          _
        // Predicated region
        $region140: #{circular_conv3d.1} parent=31 // pred_check
          _
        $region141: #{circular_conv3d.1} parent=31 // pred_check_branch
          %400 = sbr.rel (0) target = $region143
        $region142: #{circular_conv3d.1} parent=31 // pred_region
          %401 = vsyncadd %s321, 128
        $region143: #{circular_conv3d.1} parent=31 // pred_fallthru
          _
        %402 = vst [vmem:[#allocation4 + $0xd0] sm:$0xf0] 0.0
        %403 = vst [vmem:[#allocation4 + $0xd8] sm:$0xf0] 0.0
      $region32: #{circular_conv3d.1} parent=27 // pred_fallthru
        _
      %s404 = sadd.s32 %s19, 1
      %p405 = scmp.lt.s32.totalorder %s404, 8
      // Predicated region
      $region144: #{circular_conv3d.1} parent=27 // pred_check
        %p406 = pneg %p405
      $region145: #{circular_conv3d.1} parent=27 // pred_check_branch
        %408 = sbr.rel (%p406) target = $region147
      $region146: #{circular_conv3d.1} parent=27 // pred_region
        %s409 = sadd.s32 %s19, 3
        %p410 = scmp.lt.s32.totalorder %s409, 0
        %s411 = ssub.s32 0, %s409
        %s412 = scalar_select %p410, %s411, %s409
        %s413 = sand.u32 %s412, 3
        %s414 = ssub.s32 0, %s413
        %s415 = scalar_select %p410, %s414, %s413
        %p416 = scmp.ne.s32.totalorder %s415, 0
        %p417 = scmp.lt.s32.totalorder %s415, 0
        %p418 = pnand %p417, %p416
        %p419 = pneg %p418
        %s420 = sadd.s32 %s415, 4
        %s421 = scalar_select %p419, %s420, %s415
        %s422 = sadd.s32 %s19, 2
        %p423 = scmp.lt.s32.totalorder %s422, 0
        %s424 = ssub.s32 0, %s422
        %s425 = scalar_select %p423, %s424, %s422
        %s426 = sand.u32 %s425, 7
        %s427 = ssub.s32 0, %s426
        %s428 = scalar_select %p423, %s427, %s426
        %p429 = scmp.ne.s32.totalorder %s428, 0
        %p430 = scmp.lt.s32.totalorder %s428, 0
        %p431 = pnand %p430, %p429
        %p432 = pneg %p431
        %s433 = sadd.s32 %s428, 8
        %s434 = scalar_select %p432, %s433, %s428
        %s435 = sshrl.u32 %s434, 3
        %s436 = sand.u32 %s434, 7
        %s437 = smul.u32 %s435, 16
        %s438 = sadd.s32 %s436, %s437
        %s439 = smul.u32 %s18, 64
        %s440 = sadd.s32 %s438, %s439
        %s441 = scalar_lea.vmem %s0, %s440
        %s442 = smul.u32 %s421, 2
        %s443 = smul.addr %s442, 4
        %s444 = scalar_lea.vmem [#allocation2], %s443
        %s445 = scalar_lea.sflag [#allocation3], %s421
        %p447 = scmp.lt.u32.totalorder 1, 8
        %p448 = pneg %p447
        // Predicated region
        $region148: #{circular_conv3d.1} parent=146 // pred_check
          _
        $region149: #{circular_conv3d.1} parent=146 // pred_check_branch
          %450 = sbr.rel (%p447) target = $region151
        $region150: #{circular_conv3d.1} parent=146 // pred_region
          %s479 = sand.u32 1, 7
          %p480 = scmp.eq.s32.totalorder %s479, 0
          %p481 = pneg %p480
          // Predicated region
          $region163: #{circular_conv3d.1} parent=150 // pred_check
            _
          $region164: #{circular_conv3d.1} parent=150 // pred_check_branch
            %483 = sbr.rel (%p480) target = $region166
          $region165: #{circular_conv3d.1} parent=150 // pred_region
            %s484 = sand.u32 1, 7
            %s485 = ssub.s32 1, %s484
            %s486 = scalar_lea.vmem %s441, %s485
            %s487 = ssub.s32 1, %s484
            %s488 = scalar_lea.vmem %s444, %s487 [#allocation2]
            loop: start=0, step=1, limit=1
            $region167: #{circular_conv3d.1} parent=165 // loop_pre_header
              _
            $region168: #{circular_conv3d.1} parent=165 // loop_header
              %s490 = sphi 0, %s494
              %p491 = scmp.ge.s32.totalorder %s490, 1
              %s495 = sphi %s441, %s441
              %s496 = sphi %s444, %s444
            $region169: #{circular_conv3d.1} parent=165 // loop_header_branch
              %493 = sbr.rel (%p491) target = $region173
            $region170: #{circular_conv3d.1} parent=165 // loop_body
              _
            $region171: #{circular_conv3d.1} parent=165 // loop_footer
              %s494 = sadd.s32 1, %s490
            $region172: #{circular_conv3d.1} parent=165 // loop_footer_branch
              %489 = sbr.rel target = $region168
            $region173: #{circular_conv3d.1} parent=165 // loop_exit
              _
            %s497 = sshllo.u32 0, %s484
            loop: start=0, step=1, limit=1
            $region174: #{circular_conv3d.1} parent=165 // loop_pre_header
              _
            $region175: #{circular_conv3d.1} parent=165 // loop_header
              %s499 = sphi 0, %s503
              %p500 = scmp.ge.s32.totalorder %s499, 1
              %s504 = sphi %s486, %s486
              %s505 = sphi %s488, %s488
            $region176: #{circular_conv3d.1} parent=165 // loop_header_branch
              %502 = sbr.rel (%p500) target = $region180
            $region177: #{circular_conv3d.1} parent=165 // loop_body
              %v506 = vld [vmem:[%s504] sm:%s497]
              %507 = vst [vmem:[%s505] sm:%s497] %v506
              %v508 = vld [vmem:[%s504 + $0x10] sm:%s497]
              %509 = vst [vmem:[%s505 + $0x1] sm:%s497] %v508
              %v510 = vld [vmem:[%s504 + $0x20] sm:%s497]
              %511 = vst [vmem:[%s505 + $0x2] sm:%s497] %v510
              %v512 = vld [vmem:[%s504 + $0x30] sm:%s497]
              %513 = vst [vmem:[%s505 + $0x3] sm:%s497] %v512
              %v514 = vld [vmem:[%s504 + $0x8] sm:%s497]
              %515 = vst [vmem:[%s505 + $0x4] sm:%s497] %v514
              %v516 = vld [vmem:[%s504 + $0x18] sm:%s497]
              %517 = vst [vmem:[%s505 + $0x5] sm:%s497] %v516
              %v518 = vld [vmem:[%s504 + $0x28] sm:%s497]
              %519 = vst [vmem:[%s505 + $0x6] sm:%s497] %v518
              %v520 = vld [vmem:[%s504 + $0x38] sm:%s497]
              %521 = vst [vmem:[%s505 + $0x7] sm:%s497] %v520
            $region178: #{circular_conv3d.1} parent=165 // loop_footer
              %s503 = sadd.s32 1, %s499
            $region179: #{circular_conv3d.1} parent=165 // loop_footer_branch
              %498 = sbr.rel target = $region175
            $region180: #{circular_conv3d.1} parent=165 // loop_exit
              _
          $region166: #{circular_conv3d.1} parent=150 // pred_fallthru
            _
        $region151: #{circular_conv3d.1} parent=146 // pred_fallthru
          _
        // Predicated region
        $region152: #{circular_conv3d.1} parent=146 // pred_check
          %p451 = pneg %p447
        $region153: #{circular_conv3d.1} parent=146 // pred_check_branch
          %453 = sbr.rel (%p451) target = $region155
        $region154: #{circular_conv3d.1} parent=146 // pred_region
          %s454 = sshllo.u32 0, 1
          loop: start=0, step=1, limit=1
          $region156: #{circular_conv3d.1} parent=154 // loop_pre_header
            _
          $region157: #{circular_conv3d.1} parent=154 // loop_header
            %s456 = sphi 0, %s460
            %p457 = scmp.ge.s32.totalorder %s456, 1
            %s461 = sphi %s441, %s441
            %s462 = sphi %s444, %s444
          $region158: #{circular_conv3d.1} parent=154 // loop_header_branch
            %459 = sbr.rel (%p457) target = $region162
          $region159: #{circular_conv3d.1} parent=154 // loop_body
            %v463 = vld [vmem:[%s461] sm:%s454]
            %464 = vst [vmem:[%s462] sm:%s454] %v463
            %v465 = vld [vmem:[%s461 + $0x10] sm:%s454]
            %466 = vst [vmem:[%s462 + $0x1] sm:%s454] %v465
            %v467 = vld [vmem:[%s461 + $0x20] sm:%s454]
            %468 = vst [vmem:[%s462 + $0x2] sm:%s454] %v467
            %v469 = vld [vmem:[%s461 + $0x30] sm:%s454]
            %470 = vst [vmem:[%s462 + $0x3] sm:%s454] %v469
            %v471 = vld [vmem:[%s461 + $0x8] sm:%s454]
            %472 = vst [vmem:[%s462 + $0x4] sm:%s454] %v471
            %v473 = vld [vmem:[%s461 + $0x18] sm:%s454]
            %474 = vst [vmem:[%s462 + $0x5] sm:%s454] %v473
            %v475 = vld [vmem:[%s461 + $0x28] sm:%s454]
            %476 = vst [vmem:[%s462 + $0x6] sm:%s454] %v475
            %v477 = vld [vmem:[%s461 + $0x38] sm:%s454]
            %478 = vst [vmem:[%s462 + $0x7] sm:%s454] %v477
          $region160: #{circular_conv3d.1} parent=154 // loop_footer
            %s460 = sadd.s32 1, %s456
          $region161: #{circular_conv3d.1} parent=154 // loop_footer_branch
            %455 = sbr.rel target = $region157
          $region162: #{circular_conv3d.1} parent=154 // loop_exit
            _
        $region155: #{circular_conv3d.1} parent=146 // pred_fallthru
          _
        // Predicated region
        $region181: #{circular_conv3d.1} parent=146 // pred_check
          _
        $region182: #{circular_conv3d.1} parent=146 // pred_check_branch
          %524 = sbr.rel (0) target = $region184
        $region183: #{circular_conv3d.1} parent=146 // pred_region
          %525 = vsyncadd %s445, 128
        $region184: #{circular_conv3d.1} parent=146 // pred_fallthru
          _
      $region147: #{circular_conv3d.1} parent=27 // pred_fallthru
        _
      // Predicated region
      $region185: #{circular_conv3d.1} parent=27 // pred_check
        %p526 = pneg %p148
      $region186: #{circular_conv3d.1} parent=27 // pred_check_branch
        %528 = sbr.rel (%p526) target = $region188
      $region187: #{circular_conv3d.1} parent=27 // pred_region
        %s529 = smul.u32 4, 2
        %s530 = sshll.u32 %s529, 4
        %531 = dma.done [#allocation3], %s530
        %s532 = scalar_lea.sflag [#allocation3], 1
        %s533 = sshll.u32 %s529, 4
        %534 = dma.done %s532, %s533
      $region188: #{circular_conv3d.1} parent=27 // pred_fallthru
        _
      %s535 = sadd.s32 %s19, 2
      %p536 = scmp.lt.s32.totalorder %s535, 0
      %s537 = ssub.s32 0, %s535
      %s538 = scalar_select %p536, %s537, %s535
      %s539 = sand.u32 %s538, 3
      %s540 = ssub.s32 0, %s539
      %s541 = scalar_select %p536, %s540, %s539
      %p542 = scmp.ne.s32.totalorder %s541, 0
      %p543 = scmp.lt.s32.totalorder %s541, 0
      %p544 = pnand %p543, %p542
      %p545 = pneg %p544
      %s546 = sadd.s32 %s541, 4
      %s547 = scalar_select %p545, %s546, %s541
      %s548 = smul.u32 %s547, 2
      %s549 = smul.addr %s548, 4
      %s550 = scalar_lea.vmem [#allocation2], %s549
      %s551 = scalar_lea.sflag [#allocation3], %s547
      %s552 = smul.u32 4, 2
      %s553 = sshll.u32 %s552, 4
      %554 = dma.done %s551, %s553
      %v555 = vlaneseq
      %v556 = vand.u32 %v555, 127
      %v557 = vadd.s32 %v556, 128
      %vm558 = vcmp.lt.s32.totalorder %v556, 0
      %v559 = vsub.s32 0, %v556
      %v560 = vsel %vm558, %v559, %v556
      %v561 = vshrl.u32 %v560, 4
      %v562 = vand.u32 %v560, 15
      %v563 = vsub.s32 0, %v562
      %v564 = vsel %vm558, %v563, %v562
      %vm565 = vcmp.lt.s32.totalorder %v557, 0
      %v566 = vsub.s32 0, %v557
      %v567 = vsel %vm565, %v566, %v557
      %v568 = vshrl.u32 %v567, 4
      %v569 = vand.u32 %v567, 15
      %v570 = vsub.s32 0, %v569
      %v571 = vsel %vm565, %v570, %v569
      %vm572 = vcmp.ne.s32.totalorder %v564, 0
      %vm573 = vcmp.ne.s32.totalorder %v571, 0
      %vm574 = vcmp.lt.s32.totalorder %v564, 0
      %vm575 = vcmp.lt.s32.totalorder %v571, 0
      %vm576 = vmand %vm574, %vm572
      %vm577 = vmand %vm575, %vm573
      %v578 = vadd.s32 %v564, 16
      %v579 = vadd.s32 %v571, 16
      %v580 = vsel %vm576, %v578, %v564
      %v581 = vsel %vm577, %v579, %v571
      %vm582 = vcmp.lt.s32.totalorder %v580, 1
      %vm583 = vcmp.lt.s32.totalorder %v581, 1
      %vm584 = vcmp.lt.s32.totalorder %v580, 15
      %vm585 = vcmp.lt.s32.totalorder %v581, 15
      %p586 = scmp.lt.s32.totalorder %s19, 0
      %s587 = ssub.s32 0, %s19
      %s588 = scalar_select %p586, %s587, %s19
      %s589 = sand.u32 %s588, 3
      %s590 = ssub.s32 0, %s589
      %s591 = scalar_select %p586, %s590, %s589
      %p592 = scmp.ne.s32.totalorder %s591, 0
      %p593 = scmp.lt.s32.totalorder %s591, 0
      %p594 = pnand %p593, %p592
      %p595 = pneg %p594
      %s596 = sadd.s32 %s591, 4
      %s597 = scalar_select %p595, %s596, %s591
      %s598 = smul.u32 %s597, 2
      %s599 = smul.addr %s598, 4
      %s600 = scalar_lea.vmem [#allocation2], %s599
      %v601 = vld [vmem:[%s600] sm:$0xff]
      %v603 = vcombine.high %v601, %v601
      %605 = vrot.lane.b32.xlu0 %v601, 1
      %v606 = vpop.permute.xlu0 %605
      %607 = vrot.lane.b32.xlu0 %v603, 1
      %v608 = vpop.permute.xlu0 %607
      %vm609 = vcmp.lt.s32.totalorder %v556, 1
      %v610 = vsel %vm609, %v606, %v608
      %v611 = vsel %vm609, %v608, %v606
      %612 = vrot.lane.b32.xlu0 %v601, 113
      %v613 = vpop.permute.xlu0 %612
      %614 = vrot.lane.b32.xlu0 %v603, 113
      %v615 = vpop.permute.xlu0 %614
      %vm616 = vcmp.lt.s32.totalorder %v556, 113
      %v617 = vsel %vm616, %v613, %v615
      %v618 = vsel %vm616, %v615, %v613
      %v619 = vsel %vm582, 1, 0
      %v620 = vsel %vm583, 1, 0
      %vm621 = vcmp.eq.s32.totalorder %v619, 1
      %vm622 = vcmp.eq.s32.totalorder %v620, 1
      %v623 = vsel %vm621, %v617, %v611
      %v624 = vsel %vm622, %v618, %v610
      %625 = vrot.lane.b32.xlu0 %v623, 16
      %v626 = vpop.permute.xlu0 %625
      %627 = vrot.lane.b32.xlu0 %v624, 16
      %v628 = vpop.permute.xlu0 %627
      %vm629 = vcmp.lt.s32.totalorder %v556, 16
      %v630 = vsel %vm629, %v626, %v628
      %v631 = vsel %vm629, %v628, %v626
      %632 = vst [vmem:[#allocation4] sm:$0xf] %v631
      %633 = vst [vmem:[#allocation4 + $0x8] sm:$0xf] %v630
      %v636 = vrot.slane %v623, 4
      %v637 = vrot.slane %v624, 4
      %640 = vst [vmem:[#allocation4 + $0x10] sm:$0xf0] %v636
      %641 = vst [vmem:[#allocation4 + $0x18] sm:$0xf0] %v637
      %642 = vrot.lane.b32.xlu0 %v623, 112
      %v643 = vpop.permute.xlu0 %642
      %644 = vrot.lane.b32.xlu0 %v624, 112
      %v645 = vpop.permute.xlu0 %644
      %vm646 = vcmp.lt.s32.totalorder %v556, 112
      %v647 = vsel %vm646, %v643, %v645
      %v648 = vsel %vm646, %v645, %v643
      %649 = vst [vmem:[#allocation4 + $0x30] sm:$0xf] %v647
      %650 = vst [vmem:[#allocation4 + $0x38] sm:$0xf] %v648
      %651 = vrot.lane.b32.xlu0 %v601, 16
      %v652 = vpop.permute.xlu0 %651
      %653 = vrot.lane.b32.xlu0 %v603, 16
      %v654 = vpop.permute.xlu0 %653
      %v655 = vsel %vm629, %v652, %v654
      %v656 = vsel %vm629, %v654, %v652
      %v659 = vrot.slane %v656, 4
      %v660 = vrot.slane %v655, 4
      %663 = vst [vmem:[#allocation4] sm:$0xf0] %v659
      %664 = vst [vmem:[#allocation4 + $0x8] sm:$0xf0] %v660
      %665 = vst [vmem:[#allocation4 + $0x20] sm:$0xf] %v601
      %666 = vst [vmem:[#allocation4 + $0x28] sm:$0xf] %v603
      %667 = vrot.lane.b32.xlu0 %v601, 112
      %v668 = vpop.permute.xlu0 %667
      %669 = vrot.lane.b32.xlu0 %v603, 112
      %v670 = vpop.permute.xlu0 %669
      %v671 = vsel %vm646, %v668, %v670
      %v672 = vsel %vm646, %v670, %v668
      %v675 = vrot.slane %v671, 4
      %v676 = vrot.slane %v672, 4
      %679 = vst [vmem:[#allocation4 + $0x30] sm:$0xf0] %v675
      %680 = vst [vmem:[#allocation4 + $0x38] sm:$0xf0] %v676
      %681 = vrot.lane.b32.xlu0 %v601, 15
      %v682 = vpop.permute.xlu0 %681
      %683 = vrot.lane.b32.xlu0 %v603, 15
      %v684 = vpop.permute.xlu0 %683
      %vm685 = vcmp.lt.s32.totalorder %v556, 15
      %v686 = vsel %vm685, %v682, %v684
      %v687 = vsel %vm685, %v684, %v682
      %688 = vrot.lane.b32.xlu0 %v601, 127
      %v689 = vpop.permute.xlu0 %688
      %690 = vrot.lane.b32.xlu0 %v603, 127
      %v691 = vpop.permute.xlu0 %690
      %vm692 = vcmp.lt.s32.totalorder %v556, 127
      %v693 = vsel %vm692, %v689, %v691
      %v694 = vsel %vm692, %v691, %v689
      %v695 = vsel %vm584, 1, 0
      %v696 = vsel %vm585, 1, 0
      %vm697 = vcmp.eq.s32.totalorder %v695, 1
      %vm698 = vcmp.eq.s32.totalorder %v696, 1
      %v699 = vsel %vm697, %v693, %v687
      %v700 = vsel %vm698, %v694, %v686
      %701 = vrot.lane.b32.xlu0 %v699, 16
      %v702 = vpop.permute.xlu0 %701
      %703 = vrot.lane.b32.xlu0 %v700, 16
      %v704 = vpop.permute.xlu0 %703
      %v705 = vsel %vm629, %v702, %v704
      %v706 = vsel %vm629, %v704, %v702
      %707 = vst [vmem:[#allocation4 + $0x10] sm:$0xf] %v706
      %708 = vst [vmem:[#allocation4 + $0x18] sm:$0xf] %v705
      %v711 = vrot.slane %v699, 4
      %v712 = vrot.slane %v700, 4
      %715 = vst [vmem:[#allocation4 + $0x20] sm:$0xf0] %v711
      %716 = vst [vmem:[#allocation4 + $0x28] sm:$0xf0] %v712
      %717 = vrot.lane.b32.xlu0 %v699, 112
      %v718 = vpop.permute.xlu0 %717
      %719 = vrot.lane.b32.xlu0 %v700, 112
      %v720 = vpop.permute.xlu0 %719
      %v721 = vsel %vm646, %v718, %v720
      %v722 = vsel %vm646, %v720, %v718
      %723 = vst [vmem:[#allocation4 + $0x40] sm:$0xf] %v721
      %724 = vst [vmem:[#allocation4 + $0x48] sm:$0xf] %v722
      %p725 = scmp.lt.s32.totalorder %s404, 0
      %s726 = ssub.s32 0, %s404
      %s727 = scalar_select %p725, %s726, %s404
      %s728 = sand.u32 %s727, 3
      %s729 = ssub.s32 0, %s728
      %s730 = scalar_select %p725, %s729, %s728
      %p731 = scmp.ne.s32.totalorder %s730, 0
      %p732 = scmp.lt.s32.totalorder %s730, 0
      %p733 = pnand %p732, %p731
      %p734 = pneg %p733
      %s735 = sadd.s32 %s730, 4
      %s736 = scalar_select %p734, %s735, %s730
      %s737 = smul.u32 %s736, 2
      %s738 = smul.addr %s737, 4
      %s739 = scalar_lea.vmem [#allocation2], %s738
      %v740 = vld [vmem:[%s739] sm:$0xff]
      %v742 = vcombine.high %v740, %v740
      %744 = vrot.lane.b32.xlu0 %v740, 1
      %v745 = vpop.permute.xlu0 %744
      %746 = vrot.lane.b32.xlu0 %v742, 1
      %v747 = vpop.permute.xlu0 %746
      %v748 = vsel %vm609, %v745, %v747
      %v749 = vsel %vm609, %v747, %v745
      %750 = vrot.lane.b32.xlu0 %v740, 113
      %v751 = vpop.permute.xlu0 %750
      %752 = vrot.lane.b32.xlu0 %v742, 113
      %v753 = vpop.permute.xlu0 %752
      %v754 = vsel %vm616, %v751, %v753
      %v755 = vsel %vm616, %v753, %v751
      %v756 = vsel %vm621, %v754, %v749
      %v757 = vsel %vm622, %v755, %v748
      %758 = vrot.lane.b32.xlu0 %v756, 16
      %v759 = vpop.permute.xlu0 %758
      %760 = vrot.lane.b32.xlu0 %v757, 16
      %v761 = vpop.permute.xlu0 %760
      %v762 = vsel %vm629, %v759, %v761
      %v763 = vsel %vm629, %v761, %v759
      %v766 = vrot.slane %v763, 4
      %v767 = vrot.slane %v762, 4
      %770 = vst [vmem:[#allocation4 + $0x40] sm:$0xf0] %v766
      %771 = vst [vmem:[#allocation4 + $0x48] sm:$0xf0] %v767
      %772 = vst [vmem:[#allocation4 + $0x60] sm:$0xf] %v756
      %773 = vst [vmem:[#allocation4 + $0x68] sm:$0xf] %v757
      %774 = vrot.lane.b32.xlu0 %v756, 112
      %v775 = vpop.permute.xlu0 %774
      %776 = vrot.lane.b32.xlu0 %v757, 112
      %v777 = vpop.permute.xlu0 %776
      %v778 = vsel %vm646, %v775, %v777
      %v779 = vsel %vm646, %v777, %v775
      %v782 = vrot.slane %v778, 4
      %v783 = vrot.slane %v779, 4
      %786 = vst [vmem:[#allocation4 + $0x70] sm:$0xf0] %v782
      %787 = vst [vmem:[#allocation4 + $0x78] sm:$0xf0] %v783
      %788 = vrot.lane.b32.xlu0 %v740, 16
      %v789 = vpop.permute.xlu0 %788
      %790 = vrot.lane.b32.xlu0 %v742, 16
      %v791 = vpop.permute.xlu0 %790
      %v792 = vsel %vm629, %v789, %v791
      %v793 = vsel %vm629, %v791, %v789
      %794 = vst [vmem:[#allocation4 + $0x50] sm:$0xf] %v793
      %795 = vst [vmem:[#allocation4 + $0x58] sm:$0xf] %v792
      %v796 = vcombine.low %v740, %v740
      %798 = vst [vmem:[#allocation4 + $0x60] sm:$0xf0] %v796
      %799 = vst [vmem:[#allocation4 + $0x68] sm:$0xf0] %v740
      %800 = vrot.lane.b32.xlu0 %v740, 112
      %v801 = vpop.permute.xlu0 %800
      %802 = vrot.lane.b32.xlu0 %v742, 112
      %v803 = vpop.permute.xlu0 %802
      %v804 = vsel %vm646, %v801, %v803
      %v805 = vsel %vm646, %v803, %v801
      %806 = vst [vmem:[#allocation4 + $0x80] sm:$0xf] %v804
      %807 = vst [vmem:[#allocation4 + $0x88] sm:$0xf] %v805
      %808 = vrot.lane.b32.xlu0 %v740, 15
      %v809 = vpop.permute.xlu0 %808
      %810 = vrot.lane.b32.xlu0 %v742, 15
      %v811 = vpop.permute.xlu0 %810
      %v812 = vsel %vm685, %v809, %v811
      %v813 = vsel %vm685, %v811, %v809
      %814 = vrot.lane.b32.xlu0 %v740, 127
      %v815 = vpop.permute.xlu0 %814
      %816 = vrot.lane.b32.xlu0 %v742, 127
      %v817 = vpop.permute.xlu0 %816
      %v818 = vsel %vm692, %v815, %v817
      %v819 = vsel %vm692, %v817, %v815
      %v820 = vsel %vm697, %v818, %v813
      %v821 = vsel %vm698, %v819, %v812
      %822 = vrot.lane.b32.xlu0 %v820, 16
      %v823 = vpop.permute.xlu0 %822
      %824 = vrot.lane.b32.xlu0 %v821, 16
      %v825 = vpop.permute.xlu0 %824
      %v826 = vsel %vm629, %v823, %v825
      %v827 = vsel %vm629, %v825, %v823
      %v830 = vrot.slane %v827, 4
      %v831 = vrot.slane %v826, 4
      %834 = vst [vmem:[#allocation4 + $0x50] sm:$0xf0] %v830
      %835 = vst [vmem:[#allocation4 + $0x58] sm:$0xf0] %v831
      %836 = vst [vmem:[#allocation4 + $0x70] sm:$0xf] %v820
      %837 = vst [vmem:[#allocation4 + $0x78] sm:$0xf] %v821
      %838 = vrot.lane.b32.xlu0 %v820, 112
      %v839 = vpop.permute.xlu0 %838
      %840 = vrot.lane.b32.xlu0 %v821, 112
      %v841 = vpop.permute.xlu0 %840
      %v842 = vsel %vm646, %v839, %v841
      %v843 = vsel %vm646, %v841, %v839
      %v846 = vrot.slane %v842, 4
      %v847 = vrot.slane %v843, 4
      %850 = vst [vmem:[#allocation4 + $0x80] sm:$0xf0] %v846
      %851 = vst [vmem:[#allocation4 + $0x88] sm:$0xf0] %v847
      %v852 = vld [vmem:[%s550] sm:$0xff]
      %v854 = vcombine.high %v852, %v852
      %856 = vrot.lane.b32.xlu0 %v852, 1
      %v857 = vpop.permute.xlu0 %856
      %858 = vrot.lane.b32.xlu0 %v854, 1
      %v859 = vpop.permute.xlu0 %858
      %v860 = vsel %vm609, %v857, %v859
      %v861 = vsel %vm609, %v859, %v857
      %862 = vrot.lane.b32.xlu0 %v852, 113
      %v863 = vpop.permute.xlu0 %862
      %864 = vrot.lane.b32.xlu0 %v854, 113
      %v865 = vpop.permute.xlu0 %864
      %v866 = vsel %vm616, %v863, %v865
      %v867 = vsel %vm616, %v865, %v863
      %v868 = vsel %vm621, %v866, %v861
      %v869 = vsel %vm622, %v867, %v860
      %870 = vrot.lane.b32.xlu0 %v868, 16
      %v871 = vpop.permute.xlu0 %870
      %872 = vrot.lane.b32.xlu0 %v869, 16
      %v873 = vpop.permute.xlu0 %872
      %v874 = vsel %vm629, %v871, %v873
      %v875 = vsel %vm629, %v873, %v871
      %876 = vst [vmem:[#allocation4 + $0x90] sm:$0xf] %v875
      %877 = vst [vmem:[#allocation4 + $0x98] sm:$0xf] %v874
      %v880 = vrot.slane %v868, 4
      %v881 = vrot.slane %v869, 4
      %884 = vst [vmem:[#allocation4 + $0xa0] sm:$0xf0] %v880
      %885 = vst [vmem:[#allocation4 + $0xa8] sm:$0xf0] %v881
      %886 = vrot.lane.b32.xlu0 %v868, 112
      %v887 = vpop.permute.xlu0 %886
      %888 = vrot.lane.b32.xlu0 %v869, 112
      %v889 = vpop.permute.xlu0 %888
      %v890 = vsel %vm646, %v887, %v889
      %v891 = vsel %vm646, %v889, %v887
      %892 = vst [vmem:[#allocation4 + $0xc0] sm:$0xf] %v890
      %893 = vst [vmem:[#allocation4 + $0xc8] sm:$0xf] %v891
      %894 = vrot.lane.b32.xlu0 %v852, 16
      %v895 = vpop.permute.xlu0 %894
      %896 = vrot.lane.b32.xlu0 %v854, 16
      %v897 = vpop.permute.xlu0 %896
      %v898 = vsel %vm629, %v895, %v897
      %v899 = vsel %vm629, %v897, %v895
      %v902 = vrot.slane %v899, 4
      %v903 = vrot.slane %v898, 4
      %906 = vst [vmem:[#allocation4 + $0x90] sm:$0xf0] %v902
      %907 = vst [vmem:[#allocation4 + $0x98] sm:$0xf0] %v903
      %908 = vst [vmem:[#allocation4 + $0xb0] sm:$0xf] %v852
      %909 = vst [vmem:[#allocation4 + $0xb8] sm:$0xf] %v854
      %910 = vrot.lane.b32.xlu0 %v852, 112
      %v911 = vpop.permute.xlu0 %910
      %912 = vrot.lane.b32.xlu0 %v854, 112
      %v913 = vpop.permute.xlu0 %912
      %v914 = vsel %vm646, %v911, %v913
      %v915 = vsel %vm646, %v913, %v911
      %v918 = vrot.slane %v914, 4
      %v919 = vrot.slane %v915, 4
      %922 = vst [vmem:[#allocation4 + $0xc0] sm:$0xf0] %v918
      %923 = vst [vmem:[#allocation4 + $0xc8] sm:$0xf0] %v919
      %924 = vrot.lane.b32.xlu0 %v852, 15
      %v925 = vpop.permute.xlu0 %924
      %926 = vrot.lane.b32.xlu0 %v854, 15
      %v927 = vpop.permute.xlu0 %926
      %v928 = vsel %vm685, %v925, %v927
      %v929 = vsel %vm685, %v927, %v925
      %930 = vrot.lane.b32.xlu0 %v852, 127
      %v931 = vpop.permute.xlu0 %930
      %932 = vrot.lane.b32.xlu0 %v854, 127
      %v933 = vpop.permute.xlu0 %932
      %v934 = vsel %vm692, %v931, %v933
      %v935 = vsel %vm692, %v933, %v931
      %v936 = vsel %vm697, %v934, %v929
      %v937 = vsel %vm698, %v935, %v928
      %938 = vrot.lane.b32.xlu0 %v936, 16
      %v939 = vpop.permute.xlu0 %938
      %940 = vrot.lane.b32.xlu0 %v937, 16
      %v941 = vpop.permute.xlu0 %940
      %v942 = vsel %vm629, %v939, %v941
      %v943 = vsel %vm629, %v941, %v939
      %944 = vst [vmem:[#allocation4 + $0xa0] sm:$0xf] %v943
      %945 = vst [vmem:[#allocation4 + $0xa8] sm:$0xf] %v942
      %v948 = vrot.slane %v936, 4
      %v949 = vrot.slane %v937, 4
      %952 = vst [vmem:[#allocation4 + $0xb0] sm:$0xf0] %v948
      %953 = vst [vmem:[#allocation4 + $0xb8] sm:$0xf0] %v949
      %954 = vrot.lane.b32.xlu0 %v936, 112
      %v955 = vpop.permute.xlu0 %954
      %956 = vrot.lane.b32.xlu0 %v937, 112
      %v957 = vpop.permute.xlu0 %956
      %v958 = vsel %vm646, %v955, %v957
      %v959 = vsel %vm646, %v957, %v955
      %960 = vst [vmem:[#allocation4 + $0xd0] sm:$0xf] %v958
      %961 = vst [vmem:[#allocation4 + $0xd8] sm:$0xf] %v959
      %v962 = vld [vmem:[%s1] sm:$0xff]
      %v963 = vld [vmem:[#allocation4] sm:$0xff]
      %v964 = vld [vmem:[#allocation4 + $0x8] sm:$0xff]
      %v965 = vld [vmem:[#allocation4 + $0x10] sm:$0xff]
      %v966 = vld [vmem:[#allocation4 + $0x18] sm:$0xff]
      %v967 = vld [vmem:[#allocation4 + $0x20] sm:$0xff]
      %v968 = vld [vmem:[#allocation4 + $0x28] sm:$0xff]
      %v969 = vld [vmem:[#allocation4 + $0x30] sm:$0xff]
      %v970 = vld [vmem:[#allocation4 + $0x38] sm:$0xff]
      %v971 = vld [vmem:[#allocation4 + $0x40] sm:$0xff]
      %v972 = vld [vmem:[#allocation4 + $0x48] sm:$0xff]
      %v973 = vld [vmem:[#allocation4 + $0x50] sm:$0xff]
      %v974 = vld [vmem:[#allocation4 + $0x58] sm:$0xff]
      %v975 = vld [vmem:[#allocation4 + $0x60] sm:$0xff]
      %v976 = vld [vmem:[#allocation4 + $0x68] sm:$0xff]
      %v977 = vld [vmem:[#allocation4 + $0x70] sm:$0xff]
      %v978 = vld [vmem:[#allocation4 + $0x78] sm:$0xff]
      %v979 = vld [vmem:[#allocation4 + $0x80] sm:$0xff]
      %v980 = vld [vmem:[#allocation4 + $0x88] sm:$0xff]
      %v981 = vld [vmem:[#allocation4 + $0x90] sm:$0xff]
      %v982 = vld [vmem:[#allocation4 + $0x98] sm:$0xff]
      %v983 = vld [vmem:[#allocation4 + $0xa0] sm:$0xff]
      %v984 = vld [vmem:[#allocation4 + $0xa8] sm:$0xff]
      %v985 = vld [vmem:[#allocation4 + $0xb0] sm:$0xff]
      %v986 = vld [vmem:[#allocation4 + $0xb8] sm:$0xff]
      %v987 = vld [vmem:[#allocation4 + $0xc0] sm:$0xff]
      %v988 = vld [vmem:[#allocation4 + $0xc8] sm:$0xff]
      %v989 = vld [vmem:[#allocation4 + $0xd0] sm:$0xff]
      %v990 = vld [vmem:[#allocation4 + $0xd8] sm:$0xff]
      %v991 = vld [vmem:[%s2] sm:$0xff]
      %993 = vset.pattern.permute.xlu0 0
      %994 = vperm.xlu0 %993, %v991
      %v995 = vpop.permute.xlu0 %994
      %vm997 = vcmask 916480
      %v999 = vsel %vm997, %v962, 0
      %1001 = vmatprep.subr.mxu0 %v964
      %1002 = vmatpush1.msra.mxu0 %v963
      %1003 = vmatprep.subr.mxu0 %v966
      %1004 = vmatpush1.msra.mxu0 %v965
      %1005 = vmatprep.subr.mxu0 %v968
      %1006 = vmatpush1.msra.mxu0 %v967
      %1007 = vmatprep.subr.mxu0 %v970
      %1008 = vmatpush1.msra.mxu0 %v969
      %1009 = vmatprep.subr.mxu0 %v972
      %1010 = vmatpush1.msra.mxu0 %v971
      %1011 = vmatprep.subr.mxu0 %v974
      %1012 = vmatpush1.msra.mxu0 %v973
      %1013 = vmatprep.subr.mxu0 %v976
      %1014 = vmatpush1.msra.mxu0 %v975
      %1015 = vmatprep.subr.mxu0 %v978
      %1016 = vmatpush1.msra.mxu0 %v977
      %1017 = vmatprep.subr.mxu0 %v980
      %1018 = vmatpush1.msra.mxu0 %v979
      %1019 = vmatprep.subr.mxu0 %v982
      %1020 = vmatpush1.msra.mxu0 %v981
      %1021 = vmatprep.subr.mxu0 %v984
      %1022 = vmatpush1.msra.mxu0 %v983
      %1023 = vmatprep.subr.mxu0 %v986
      %1024 = vmatpush1.msra.mxu0 %v985
      %1025 = vmatprep.subr.mxu0 %v988
      %1026 = vmatpush1.msra.mxu0 %v987
      %1027 = vmatprep.subr.mxu0 %v990
      %1028 = vmatpush1.msra.mxu0 %v989
      %1029 = vmatprep.subr.mxu0 0.0
      %1030 = vmatpush1.msra.mxu0 0.0
      %1031 = vmatprep.subr.mxu0 0.0
      %1032 = vmatpush1.msra.mxu0 0.0
      %1033 = vmatprep.subr.mxu0 0.0
      %1034 = vmatpush1.msra.mxu0 0.0
      %1035 = vmatprep.subr.mxu0 0.0
      %1036 = vmatpush1.msra.mxu0 0.0
      %1037 = vmatprep.subr.mxu0 0.0
      %1038 = vmatpush1.msra.mxu0 0.0
      %1039 = vmatprep.subr.mxu0 0.0
      %1040 = vmatpush1.msra.mxu0 0.0
      %1041 = vmatprep.subr.mxu0 0.0
      %1042 = vmatpush1.msra.mxu0 0.0
      %1043 = vmatprep.subr.mxu0 0.0
      %1044 = vmatpush1.msra.mxu0 0.0
      %1045 = vmatprep.subr.mxu0 0.0
      %1046 = vmatpush1.msra.mxu0 0.0
      %1047 = vmatprep.subr.mxu0 0.0
      %1048 = vmatpush1.msra.mxu0 0.0
      %1049 = vmatprep.subr.mxu0 0.0
      %1050 = vmatpush1.msra.mxu0 0.0
      %1051 = vmatprep.subr.mxu0 0.0
      %1052 = vmatpush1.msra.mxu0 0.0
      %1053 = vmatprep.subr.mxu0 0.0
      %1054 = vmatpush1.msra.mxu0 0.0
      %1055 = vmatprep.subr.mxu0 0.0
      %1056 = vmatpush1.msra.mxu0 0.0
      %1057 = vmatprep.subr.mxu0 0.0
      %1058 = vmatpush1.msra.mxu0 0.0
      %1059 = vmatprep.subr.mxu0 0.0
      %1060 = vmatpush1.msra.mxu0 0.0
      %1061 = vmatprep.subr.mxu0 0.0
      %1062 = vmatpush1.msra.mxu0 0.0
      %1063 = vmatprep.subr.mxu0 0.0
      %1064 = vmatpush1.msra.mxu0 0.0
      %1065 = vmatprep.mubr.f32.mxu0 0.0
      %1066 = vmatmul.mubr.f32.gmra.mrb[0].mxu0 %v999
      %v1067 = vpop.f32.mrb[0].mxu0
      %v1068 = vadd.f32 %v995, %v1067
      %v1069 = vpop.f32.mrb[0].mxu0
      %v1070 = vadd.f32 %v995, %v1069
      %1071 = vdwg.mxu0
      %1072 = vst [vmem:[%s146] sm:$0xff] %v1068
      %1073 = vst [vmem:[%s146 + $0x8] sm:$0xff] %v1070
      %s1074 = smul.u32 2, %s19
      %p1075 = scmp.lt.s32.totalorder %s18, 1
      %s1076 = scalar_select %p1075, %s18, 1
      %p1077 = scmp.lt.s32.totalorder %s1074, 15
      %s1078 = scalar_select %p1077, %s1074, 15
      %s1079 = smul.addr %s1076, 16
      %s1080 = sadd.s32 %s1078, %s1079
      %s1081 = smul.addr %s1080, 8
      %s1082 = scalar_lea.vmem %s3, %s1081
      // Predicated region
      $region189: #{circular_conv3d.1} parent=27 // pred_check
        %p1083 = pneg %p88
      $region190: #{circular_conv3d.1} parent=27 // pred_check_branch
        %1085 = sbr.rel (%p1083) target = $region192
      $region191: #{circular_conv3d.1} parent=27 // pred_region
        %s1086 = smul.u32 2, %s19
      $region192: #{circular_conv3d.1} parent=27 // pred_fallthru
        _
    $region28: #{circular_conv3d.1} parent=5 // pred_fallthru
      _
    %p1087 = scmp.le.s32.totalorder 2, %s9
    // Predicated region
    $region193: #{circular_conv3d.1} parent=5 // pred_check
      %p1088 = pneg %p1087
    $region194: #{circular_conv3d.1} parent=5 // pred_check_branch
      %1090 = sbr.rel (%p1088) target = $region196
    $region195: #{circular_conv3d.1} parent=5 // pred_region
      %s1091 = ssub.s32 %s9, 2
      // Predicated region
      $region197: #{circular_conv3d.1} parent=195 // pred_check
        %p1092 = pneg %p94
      $region198: #{circular_conv3d.1} parent=195 // pred_check_branch
        %1094 = sbr.rel (%p1092) target = $region200
      $region199: #{circular_conv3d.1} parent=195 // pred_region
        %s1095 = smul.u32 2, %s21
        %p1096 = scmp.lt.s32.totalorder %s20, 1
        %s1097 = scalar_select %p1096, %s20, 1
        %p1098 = scmp.lt.s32.totalorder %s1095, 15
        %s1099 = scalar_select %p1098, %s1095, 15
        %s1100 = smul.addr %s1097, 16
        %s1101 = sadd.s32 %s1099, %s1100
        %s1102 = smul.addr %s1101, 8
        %s1103 = scalar_lea.vmem %s3, %s1102
      $region200: #{circular_conv3d.1} parent=195 // pred_fallthru
        _
    $region196: #{circular_conv3d.1} parent=5 // pred_fallthru
      _
  $region6: #{circular_conv3d.1} parent=0 // loop_footer
    %s13 = sadd.s32 1, %s9
  $region7: #{circular_conv3d.1} parent=0 // loop_footer_branch
    %8 = sbr.rel target = $region3
  $region8: #{circular_conv3d.1} parent=0 // loop_exit
    _
  %1104 = vsyncmov [#allocation3]
  %s1105 = vpop.sfrf %1104
  %p1106 = scmp.eq.s32.totalorder %s1105, 0
  %p1107 = pneg %p1106
  %1109 = shalt.err (%p1107)
  %s1110 = scalar_lea.sflag [#allocation3], 1
  %1111 = vsyncmov %s1110
  %s1112 = vpop.sfrf %1111
  %p1113 = scmp.eq.s32.totalorder %s1112, 0
  %p1114 = pneg %p1113
  %1116 = shalt.err (%p1114)
  %s1117 = scalar_lea.sflag [#allocation3], 2
  %1118 = vsyncmov %s1117
  %s1119 = vpop.sfrf %1118
  %p1120 = scmp.eq.s32.totalorder %s1119, 0
  %p1121 = pneg %p1120
  %1123 = shalt.err (%p1121)
  %s1124 = scalar_lea.sflag [#allocation3], 3
  %1125 = vsyncmov %s1124
  %s1126 = vpop.sfrf %1125
  %p1127 = scmp.eq.s32.totalorder %s1126, 0
  %p1128 = pneg %p1127
  %1130 = shalt.err (%p1128)

</llo_original>
